<compile_context>
chip_gen: v7x
topology: tpu7x:2x2x1
jax: 0.10.0
libtpu: 0.0.40
codegen_flags: <defaults>
</compile_context>

<pallas_src>
import math

import jax
import jax.numpy as jnp
from jax import lax
from jax.experimental import pallas as pl
from jax.experimental.pallas import tpu as pltpu

# ---------------- small hyper-parameters consistent with the module ---------
BATCH = 2
SEQ = 8
TOKENS = BATCH * SEQ
INPUT_DIM = 4
EMB_DIM = 32          # emb_dim
NHEAD = 4             # nhead (EMB_DIM % NHEAD == 0)
HEAD_DIM = EMB_DIM // NHEAD
NUM_LAYERS = 2
FF_DIM = 2048         # nn.TransformerEncoderLayer default dim_feedforward
FF_CHUNK = 1024       # FF inner-dim chunk per grid step
N_CHUNKS = FF_DIM // FF_CHUNK
LATENT_DIM = 16
LN_EPS = 1e-5
HT = NHEAD * TOKENS   # head-folded row axis for attention


def _ln(x, w, b):
    m = jnp.mean(x, axis=-1, keepdims=True)
    c = x - m
    v = jnp.mean(c * c, axis=-1, keepdims=True)
    return c * lax.rsqrt(v + LN_EPS) * w + b


def _split_heads(m):
    """(TOKENS, NHEAD*HEAD_DIM) -> (NHEAD*TOKENS, HEAD_DIM), head-major rows.

    Static lane slices + sublane concat only (no jnp.transpose)."""
    return jnp.concatenate(
        [m[:, i * HEAD_DIM:(i + 1) * HEAD_DIM] for i in range(NHEAD)], axis=0)


def _merge_heads(m):
    """(NHEAD*TOKENS, HEAD_DIM) -> (TOKENS, NHEAD*HEAD_DIM)."""
    return jnp.concatenate(
        [m[i * TOKENS:(i + 1) * TOKENS, :] for i in range(NHEAD)], axis=1)


def vae_encoder_kernel(
    x_ref, peb_ref, emb_w_ref,
    ipw_ref, ipb_ref, opw_ref, opb_ref,
    l1w_ref, l1b_ref, l2w_ref, l2b_ref,
    n1w_ref, n1b_ref, n2w_ref, n2b_ref,
    mask_ref, pool_ref, mlvw_ref, mlvb_ref,
    mlv_ref,
    h_scr, ff_scr,
):
    # grid = (layer, ff_chunk); both axes carry VMEM state -> sequential.
    l = pl.program_id(0)
    c = pl.program_id(1)
    nc = pl.num_programs(1)

    # ------ embedding + multi-head self-attention (first chunk of a layer) --
    @pl.when(c == 0)
    def _attention():
        @pl.when(l == 0)
        def _embed():
            h_scr[...] = (jnp.dot(x_ref[...], emb_w_ref[...],
                                  preferred_element_type=jnp.float32)
                          + peb_ref[...])

        h = h_scr[...]
        hb = h.astype(jnp.bfloat16)
        # single lane-dense QKV projection; 1/sqrt(head_dim) folded into the
        # Q columns of in_proj (weight and bias) in prepare_params().
        qkv = (jnp.dot(hb, ipw_ref[...], preferred_element_type=jnp.float32)
               + ipb_ref[...]).astype(jnp.bfloat16)
        qbig = _split_heads(qkv[:, :EMB_DIM])                      # (HT, D)
        kbig = _split_heads(qkv[:, EMB_DIM:2 * EMB_DIM])           # (HT, D)
        vbig = _split_heads(qkv[:, 2 * EMB_DIM:])                  # (HT, D)
        # one masked (HT, HT) score slab: cross-head / cross-batch pairs are
        # killed by the additive block-diagonal mask.  No row-max subtraction:
        # scores are bounded at this scale and exp(mask) just underflows to 0.
        s = lax.dot_general(qbig, kbig, (((1,), (1,)), ((), ())),
                            preferred_element_type=jnp.float32)
        p = jnp.exp(s + mask_ref[...])
        denom = jnp.sum(p, axis=-1, keepdims=True)
        p = p * pl.reciprocal(denom, approx=True)
        o = jnp.dot(p.astype(jnp.bfloat16), vbig,
                    preferred_element_type=jnp.float32)            # (HT, D)
        attn = (jnp.dot(_merge_heads(o).astype(jnp.bfloat16), opw_ref[...],
                        preferred_element_type=jnp.float32)
                + opb_ref[...])
        h_scr[...] = _ln(h + attn, n1w_ref[...], n1b_ref[...])
        ff_scr[...] = jnp.zeros((TOKENS, EMB_DIM), jnp.float32)

    # ------ feed-forward chunk (relu), runs every grid step ------------------
    # TODO(synk): dropout (p=0.1) layers are identity here (eval-mode semantics).
    hb = h_scr[...].astype(jnp.bfloat16)
    f1 = (jnp.dot(hb, l1w_ref[...], preferred_element_type=jnp.float32)
          + l1b_ref[...])
    f1 = jnp.maximum(f1, 0.0).astype(jnp.bfloat16)
    # down-projection keeps the lane-dense (EMB, FF) PyTorch layout: A @ B^T.
    ff_scr[...] += lax.dot_general(f1, l2w_ref[...], (((1,), (1,)), ((), ())),
                                   preferred_element_type=jnp.float32)

    # ------ FF finalize (+ VAE head on the very last step) -------------------
    @pl.when(c == nc - 1)
    def _finalize():
        h = _ln(h_scr[...] + ff_scr[...] + l2b_ref[...],
                n2w_ref[...], n2b_ref[...])
        h_scr[...] = h

        @pl.when(l == NUM_LAYERS - 1)
        def _head():
            enc = jnp.dot(pool_ref[...], h,
                          preferred_element_type=jnp.float32)      # (B, EMB)
            mlv_ref[...] = (jnp.dot(enc, mlvw_ref[...],
                                    preferred_element_type=jnp.float32)
                            + mlvb_ref[...])


# ------------------------------ glue / wrapper -------------------------------
def positional_encoding(seq_len, d_model):
    position = jnp.arange(seq_len, dtype=jnp.float32)[:, None]
    div_term = jnp.exp(jnp.arange(0, d_model, 2, dtype=jnp.float32)
                       * (-math.log(10000.0) / d_model))
    pe = jnp.zeros((seq_len, d_model), jnp.float32)
    pe = pe.at[:, 0::2].set(jnp.sin(position * div_term))
    pe = pe.at[:, 1::2].set(jnp.cos(position * div_term))
    return pe


def init_params(key):
    def linear(k, fan_in, fan_out):
        k1, k2 = jax.random.split(k)
        bound = 1.0 / math.sqrt(fan_in)
        w = jax.random.uniform(k1, (fan_out, fan_in), jnp.float32, -bound, bound)
        b = jax.random.uniform(k2, (fan_out,), jnp.float32, -bound, bound)
        return w, b

    keys = jax.random.split(key, 3 + NUM_LAYERS)
    emb_w, emb_b = linear(keys[0], INPUT_DIM, EMB_DIM)
    mu_w, mu_b = linear(keys[1], EMB_DIM, LATENT_DIM)
    lv_w, lv_b = linear(keys[2], EMB_DIM, LATENT_DIM)
    layers = []
    for l in range(NUM_LAYERS):
        lk = jax.random.split(keys[3 + l], 4)
        ipw, ipb = linear(lk[0], EMB_DIM, 3 * EMB_DIM)
        opw, opb = linear(lk[1], EMB_DIM, EMB_DIM)
        l1w, l1b = linear(lk[2], EMB_DIM, FF_DIM)
        l2w, l2b = linear(lk[3], FF_DIM, EMB_DIM)
        layers.append(dict(
            ipw=ipw, ipb=ipb, opw=opw, opb=opb,
            l1w=l1w, l1b=l1b, l2w=l2w, l2b=l2b,
            n1w=jnp.ones((EMB_DIM,), jnp.float32),
            n1b=jnp.zeros((EMB_DIM,), jnp.float32),
            n2w=jnp.ones((EMB_DIM,), jnp.float32),
            n2b=jnp.zeros((EMB_DIM,), jnp.float32)))
    return dict(emb_w=emb_w, emb_b=emb_b, mu_w=mu_w, mu_b=mu_b,
                lv_w=lv_w, lv_b=lv_b, layers=layers)


def prepare_params(params, bsz=BATCH, seq=SEQ):
    """One-time packing of module parameters into kernel-ready arrays.

    Called once outside the per-step forward so no transposes / casts / sin-cos
    run per call."""
    scale = 1.0 / math.sqrt(HEAD_DIM)
    qscale = jnp.concatenate([jnp.full((EMB_DIM,), scale, jnp.float32),
                              jnp.ones((2 * EMB_DIM,), jnp.float32)])

    def stack(fn):
        return jnp.stack([fn(p) for p in params['layers']])

    packed = dict(
        emb_w=params['emb_w'].T,                                          # (I, E)
        # pos-enc + embedding bias pre-summed into one (tokens, EMB) slab
        peb=jnp.tile(positional_encoding(seq, EMB_DIM), (bsz, 1))
            + params['emb_b'][None, :],
        ipw=stack(lambda p: p['ipw'].T * qscale[None, :]).astype(jnp.bfloat16),
        ipb=stack(lambda p: (p['ipb'] * qscale)[None, :]),                # (L,1,3E)
        opw=stack(lambda p: p['opw'].T).astype(jnp.bfloat16),             # (L,E,E)
        opb=stack(lambda p: p['opb'][None, :]),                           # (L,1,E)
        l1w=stack(lambda p: p['l1w'].T).astype(jnp.bfloat16),             # (L,E,F)
        l1b=stack(lambda p: p['l1b'][None, :]),                           # (L,1,F)
        l2w=stack(lambda p: p['l2w']).astype(jnp.bfloat16),               # (L,E,F) lane-dense
        l2b=stack(lambda p: p['l2b'][None, :]),                           # (L,1,E)
        n1w=stack(lambda p: p['n1w'][None, :]),
        n1b=stack(lambda p: p['n1b'][None, :]),
        n2w=stack(lambda p: p['n2w'][None, :]),
        n2b=stack(lambda p: p['n2b'][None, :]),
    )

    # block-diagonal additive mask over (head, batch) groups of SEQ rows
    grp = jnp.arange(NHEAD * bsz * seq) // seq
    packed['mask'] = jnp.where(grp[:, None] == grp[None, :],
                               0.0, -1e9).astype(jnp.float32)             # (HT, HT)
    # mean-pool-over-sequence matrix
    row = jnp.repeat(jnp.arange(bsz), seq)
    packed['pool'] = ((jnp.arange(bsz)[:, None] == row[None, :])
                      .astype(jnp.float32) / seq)                          # (B, T)
    # fused mu / logvar head
    packed['mlvw'] = jnp.concatenate([params['mu_w'].T, params['lv_w'].T], axis=1)
    packed['mlvb'] = jnp.concatenate([params['mu_b'], params['lv_b']])[None, :]
    return packed


@jax.jit
def transformer_vae_encoder(x, packed):
    bsz, seq, _ = x.shape
    tokens = bsz * seq

    inputs = [
        x.reshape(tokens, INPUT_DIM), packed['peb'], packed['emb_w'],
        packed['ipw'], packed['ipb'], packed['opw'], packed['opb'],
        packed['l1w'], packed['l1b'], packed['l2w'], packed['l2b'],
        packed['n1w'], packed['n1b'], packed['n2w'], packed['n2b'],
        packed['mask'], packed['pool'], packed['mlvw'], packed['mlvb'],
    ]

    const2 = lambda l, c: (0, 0)       # fetched once (block index never changes)
    layer3 = lambda l, c: (l, 0, 0)    # fetched once per layer
    chunk3 = lambda l, c: (l, 0, c)    # FF-weight chunk, pipelined per step

    in_specs = [
        pl.BlockSpec((TOKENS, INPUT_DIM), const2),              # x
        pl.BlockSpec((TOKENS, EMB_DIM), const2),                # peb
        pl.BlockSpec((INPUT_DIM, EMB_DIM), const2),             # emb_w
        pl.BlockSpec((None, EMB_DIM, 3 * EMB_DIM), layer3),     # ipw
        pl.BlockSpec((None, 1, 3 * EMB_DIM), layer3),           # ipb
        pl.BlockSpec((None, EMB_DIM, EMB_DIM), layer3),         # opw
        pl.BlockSpec((None, 1, EMB_DIM), layer3),               # opb
        pl.BlockSpec((None, EMB_DIM, FF_CHUNK), chunk3),        # l1w chunk
        pl.BlockSpec((None, 1, FF_CHUNK), chunk3),              # l1b chunk
        pl.BlockSpec((None, EMB_DIM, FF_CHUNK), chunk3),        # l2w chunk
        pl.BlockSpec((None, 1, EMB_DIM), layer3),               # l2b
        pl.BlockSpec((None, 1, EMB_DIM), layer3),               # n1w
        pl.BlockSpec((None, 1, EMB_DIM), layer3),               # n1b
        pl.BlockSpec((None, 1, EMB_DIM), layer3),               # n2w
        pl.BlockSpec((None, 1, EMB_DIM), layer3),               # n2b
        pl.BlockSpec((HT, HT), const2),                         # mask
        pl.BlockSpec((BATCH, TOKENS), const2),                  # pool
        pl.BlockSpec((EMB_DIM, 2 * LATENT_DIM), const2),        # mlvw
        pl.BlockSpec((1, 2 * LATENT_DIM), const2),              # mlvb
    ]

    out = pl.pallas_call(
        vae_encoder_kernel,
        out_shape=jax.ShapeDtypeStruct((bsz, 2 * LATENT_DIM), jnp.float32),
        grid_spec=pltpu.PrefetchScalarGridSpec(
            num_scalar_prefetch=0,
            grid=(NUM_LAYERS, N_CHUNKS),
            in_specs=in_specs,
            out_specs=pl.BlockSpec((BATCH, 2 * LATENT_DIM), const2),
            scratch_shapes=[pltpu.VMEM((TOKENS, EMB_DIM), jnp.float32),   # h carry
                            pltpu.VMEM((TOKENS, EMB_DIM), jnp.float32)]), # FF acc
        compiler_params=pltpu.CompilerParams(
            dimension_semantics=("arbitrary", "arbitrary")),
    )(*inputs)
    return out[:, :LATENT_DIM], out[:, LATENT_DIM:]


# ------------------------------ pure-JAX reference ---------------------------
def reference_forward(x, params):
    bsz, seq, _ = x.shape
    pe = positional_encoding(seq, EMB_DIM)
    h = x @ params['emb_w'].T + params['emb_b']
    h = h + pe

    def ln(y, w, b):
        m = y.mean(-1, keepdims=True)
        c = y - m
        var = (c * c).mean(-1, keepdims=True)
        return c * lax.rsqrt(var + LN_EPS) * w + b

    for p in params['layers']:
        qkv = h @ p['ipw'].T + p['ipb']
        q, k, v = jnp.split(qkv, 3, axis=-1)

        def heads(t):
            return t.reshape(bsz, seq, NHEAD, HEAD_DIM).transpose(0, 2, 1, 3)

        qh, kh, vh = heads(q), heads(k), heads(v)
        s = jnp.einsum('bhqd,bhkd->bhqk', qh, kh) / math.sqrt(HEAD_DIM)
        a = jax.nn.softmax(s, axis=-1)
        o = jnp.einsum('bhqk,bhkd->bhqd', a, vh).transpose(0, 2, 1, 3)
        o = o.reshape(bsz, seq, EMB_DIM)
        o = o @ p['opw'].T + p['opb']
        h = ln(h + o, p['n1w'], p['n1b'])
        ff = jax.nn.relu(h @ p['l1w'].T + p['l1b']) @ p['l2w'].T + p['l2b']
        h = ln(h + ff, p['n2w'], p['n2b'])

    enc = h.mean(axis=1)
    mu = enc @ params['mu_w'].T + params['mu_b']
    lv = enc @ params['lv_w'].T + params['lv_b']
    return mu, lv


if __name__ == "__main__":
    key = jax.random.PRNGKey(0)
    pkey, xkey = jax.random.split(key)
    params = init_params(pkey)
    x = jax.random.normal(xkey, (BATCH, SEQ, INPUT_DIM), jnp.float32)

    packed = prepare_params(params)            # one-time weight packing
    mu, logvar = transformer_vae_encoder(x, packed)
    jax.block_until_ready((mu, logvar))

    ref_mu, ref_lv = reference_forward(x, params)
    assert mu.shape == (BATCH, LATENT_DIM) and logvar.shape == (BATCH, LATENT_DIM)
    # Precision contract: bf16 weights/activations on the MXU, f32 accumulation,
    # LayerNorm, softmax and output heads -> ~1e-2 abs deviation budget.
    assert bool(jnp.allclose(mu, ref_mu, atol=3e-2, rtol=3e-2))
    assert bool(jnp.allclose(logvar, ref_lv, atol=3e-2, rtol=3e-2))
    print("KERNEL_OK")
</pallas_src>

<mosaic_0001>
module attributes {stable_mosaic.version = 11 : i64} {
  func.func @vae_encoder_kernel(%arg0: i32, %arg1: i32, %arg2: memref<16x4xf32, #tpu.memory_space<vmem>>, %arg3: memref<16x32xf32, #tpu.memory_space<vmem>>, %arg4: memref<4x32xf32, #tpu.memory_space<vmem>>, %arg5: memref<1x32x96xbf16, #tpu.memory_space<vmem>>, %arg6: memref<1x1x96xf32, #tpu.memory_space<vmem>>, %arg7: memref<1x32x32xbf16, #tpu.memory_space<vmem>>, %arg8: memref<1x1x32xf32, #tpu.memory_space<vmem>>, %arg9: memref<1x32x1024xbf16, #tpu.memory_space<vmem>>, %arg10: memref<1x1x1024xf32, #tpu.memory_space<vmem>>, %arg11: memref<1x32x1024xbf16, #tpu.memory_space<vmem>>, %arg12: memref<1x1x32xf32, #tpu.memory_space<vmem>>, %arg13: memref<1x1x32xf32, #tpu.memory_space<vmem>>, %arg14: memref<1x1x32xf32, #tpu.memory_space<vmem>>, %arg15: memref<1x1x32xf32, #tpu.memory_space<vmem>>, %arg16: memref<1x1x32xf32, #tpu.memory_space<vmem>>, %arg17: memref<64x64xf32, #tpu.memory_space<vmem>>, %arg18: memref<2x16xf32, #tpu.memory_space<vmem>>, %arg19: memref<32x32xf32, #tpu.memory_space<vmem>>, %arg20: memref<1x32xf32, #tpu.memory_space<vmem>>, %arg21: memref<2x32xf32, #tpu.memory_space<vmem>>, %arg22: memref<16x32xf32, #tpu.memory_space<vmem>>, %arg23: memref<16x32xf32, #tpu.memory_space<vmem>>) attributes {dimension_semantics = [#tpu.dimension_semantics<arbitrary>, #tpu.dimension_semantics<arbitrary>], iteration_bounds = array<i64: 2, 2>, scalar_prefetch = 0 : i64, scratch_operands = 2 : i64, tpu.core_type = #tpu.core_type<tc>, window_params = [{pipeline_mode = #tpu.pipeline_mode<synchronous>, transform_indices = @transform_0, window_bounds = array<i64: 16, 4>}, {pipeline_mode = #tpu.pipeline_mode<synchronous>, transform_indices = @transform_1, window_bounds = array<i64: 16, 32>}, {pipeline_mode = #tpu.pipeline_mode<synchronous>, transform_indices = @transform_2, window_bounds = array<i64: 4, 32>}, {transform_indices = @transform_3, window_bounds = array<i64: 1, 32, 96>}, {transform_indices = @transform_4, window_bounds = array<i64: 1, 1, 96>}, {transform_indices = @transform_5, window_bounds = array<i64: 1, 32, 32>}, {transform_indices = @transform_6, window_bounds = array<i64: 1, 1, 32>}, {transform_indices = @transform_7, window_bounds = array<i64: 1, 32, 1024>}, {transform_indices = @transform_8, window_bounds = array<i64: 1, 1, 1024>}, {transform_indices = @transform_9, window_bounds = array<i64: 1, 32, 1024>}, {transform_indices = @transform_10, window_bounds = array<i64: 1, 1, 32>}, {transform_indices = @transform_11, window_bounds = array<i64: 1, 1, 32>}, {transform_indices = @transform_12, window_bounds = array<i64: 1, 1, 32>}, {transform_indices = @transform_13, window_bounds = array<i64: 1, 1, 32>}, {transform_indices = @transform_14, window_bounds = array<i64: 1, 1, 32>}, {pipeline_mode = #tpu.pipeline_mode<synchronous>, transform_indices = @transform_15, window_bounds = array<i64: 64, 64>}, {pipeline_mode = #tpu.pipeline_mode<synchronous>, transform_indices = @transform_16, window_bounds = array<i64: 2, 16>}, {pipeline_mode = #tpu.pipeline_mode<synchronous>, transform_indices = @transform_17, window_bounds = array<i64: 32, 32>}, {pipeline_mode = #tpu.pipeline_mode<synchronous>, transform_indices = @transform_18, window_bounds = array<i64: 1, 32>}, {pipeline_mode = #tpu.pipeline_mode<synchronous>, transform_indices = @transform_19, window_bounds = array<i64: 2, 32>}]} {
    %c0_i32 = arith.constant 0 : i32
    %0 = arith.cmpi eq, %arg1, %c0_i32 : i32
    %1 = arith.extui %0 : i1 to i32
    %c0_i32_0 = arith.constant 0 : i32
    %2 = arith.cmpi ne, %1, %c0_i32_0 : i32
    scf.if %2 {
      %c0_i32_18 = arith.constant 0 : i32
      %24 = arith.cmpi eq, %arg0, %c0_i32_18 : i32
      %25 = arith.extui %24 : i1 to i32
      %c0_i32_19 = arith.constant 0 : i32
      %26 = arith.cmpi ne, %25, %c0_i32_19 : i32
      scf.if %26 {
        %c0_57 = arith.constant 0 : index
        %c0_58 = arith.constant 0 : index
        %107 = vector.load %arg2[%c0_57, %c0_58] : memref<16x4xf32, #tpu.memory_space<vmem>>, vector<16x4xf32>
        %c0_59 = arith.constant 0 : index
        %c0_60 = arith.constant 0 : index
        %108 = vector.load %arg4[%c0_59, %c0_60] : memref<4x32xf32, #tpu.memory_space<vmem>>, vector<4x32xf32>
        %cst_61 = arith.constant dense<0.000000e+00> : vector<16x32xf32>
        %109 = tpu.matmul %107, %108, %cst_61 {dimension_numbers = #tpu.dot_dimension_numbers<[1], [0], [0], [1], [0, 0, 1, 1], [], []>} : vector<16x4xf32>, vector<4x32xf32>, vector<16x32xf32> -> vector<16x32xf32>
        %c0_62 = arith.constant 0 : index
        %c0_63 = arith.constant 0 : index
        %110 = vector.load %arg3[%c0_62, %c0_63] : memref<16x32xf32, #tpu.memory_space<vmem>>, vector<16x32xf32>
        %111 = arith.addf %109, %110 : vector<16x32xf32>
        %c0_64 = arith.constant 0 : index
        %c0_65 = arith.constant 0 : index
        %112 = vector.load %arg22[%c0_64, %c0_65] : memref<16x32xf32, #tpu.memory_space<vmem>>, vector<16x32xf32>
        tpu.vector_store %arg22[%c0_64, %c0_65], %111 {strides = array<i32>} : memref<16x32xf32, #tpu.memory_space<vmem>>, vector<16x32xf32>,
      } else {
      }
      %c0_20 = arith.constant 0 : index
      %c0_21 = arith.constant 0 : index
      %27 = vector.load %arg22[%c0_20, %c0_21] : memref<16x32xf32, #tpu.memory_space<vmem>>, vector<16x32xf32>
      %28 = arith.truncf %27 : vector<16x32xf32> to vector<16x32xbf16>
      %c0_22 = arith.constant 0 : index
      %c0_23 = arith.constant 0 : index
      %c0_24 = arith.constant 0 : index
      %29 = vector.load %arg5[%c0_22, %c0_23, %c0_24] : memref<1x32x96xbf16, #tpu.memory_space<vmem>>, vector<1x32x96xbf16>
      %30 = vector.shape_cast %29 : vector<1x32x96xbf16> to vector<32x96xbf16>
      %cst_25 = arith.constant dense<0.000000e+00> : vector<16x96xf32>
      %31 = tpu.matmul %28, %30, %cst_25 {dimension_numbers = #tpu.dot_dimension_numbers<[1], [0], [0], [1], [0, 0, 1, 1], [], []>} : vector<16x32xbf16>, vector<32x96xbf16>, vector<16x96xf32> -> vector<16x96xf32>
      %c0_26 = arith.constant 0 : index
      %c0_27 = arith.constant 0 : index
      %c0_28 = arith.constant 0 : index
      %32 = vector.load %arg6[%c0_26, %c0_27, %c0_28] : memref<1x1x96xf32, #tpu.memory_space<vmem>>, vector<1x1x96xf32>
      %33 = vector.shape_cast %32 : vector<1x1x96xf32> to vector<1x96xf32>
      %34 = vector.broadcast %33 : vector<1x96xf32> to vector<16x96xf32>
      %35 = arith.addf %31, %34 : vector<16x96xf32>
      %36 = arith.truncf %35 : vector<16x96xf32> to vector<16x96xbf16>
      %37 = vector.extract_strided_slice %36 {offsets = [0, 0], sizes = [16, 32], strides = [1, 1]} : vector<16x96xbf16> to vector<16x32xbf16>
      %38 = vector.extract_strided_slice %37 {offsets = [0, 0], sizes = [16, 8], strides = [1, 1]} : vector<16x32xbf16> to vector<16x8xbf16>
      %39 = vector.extract_strided_slice %37 {offsets = [0, 8], sizes = [16, 8], strides = [1, 1]} : vector<16x32xbf16> to vector<16x8xbf16>
      %40 = vector.extract_strided_slice %37 {offsets = [0, 16], sizes = [16, 8], strides = [1, 1]} : vector<16x32xbf16> to vector<16x8xbf16>
      %41 = vector.extract_strided_slice %37 {offsets = [0, 24], sizes = [16, 8], strides = [1, 1]} : vector<16x32xbf16> to vector<16x8xbf16>
      %42 = tpu.concatenate %38, %39, %40, %41 in 0 : vector<16x8xbf16>, vector<16x8xbf16>, vector<16x8xbf16>, vector<16x8xbf16> -> vector<64x8xbf16>
      %43 = vector.extract_strided_slice %36 {offsets = [0, 32], sizes = [16, 32], strides = [1, 1]} : vector<16x96xbf16> to vector<16x32xbf16>
      %44 = vector.extract_strided_slice %43 {offsets = [0, 0], sizes = [16, 8], strides = [1, 1]} : vector<16x32xbf16> to vector<16x8xbf16>
      %45 = vector.extract_strided_slice %43 {offsets = [0, 8], sizes = [16, 8], strides = [1, 1]} : vector<16x32xbf16> to vector<16x8xbf16>
      %46 = vector.extract_strided_slice %43 {offsets = [0, 16], sizes = [16, 8], strides = [1, 1]} : vector<16x32xbf16> to vector<16x8xbf16>
      %47 = vector.extract_strided_slice %43 {offsets = [0, 24], sizes = [16, 8], strides = [1, 1]} : vector<16x32xbf16> to vector<16x8xbf16>
      %48 = tpu.concatenate %44, %45, %46, %47 in 0 : vector<16x8xbf16>, vector<16x8xbf16>, vector<16x8xbf16>, vector<16x8xbf16> -> vector<64x8xbf16>
      %49 = vector.extract_strided_slice %36 {offsets = [0, 64], sizes = [16, 32], strides = [1, 1]} : vector<16x96xbf16> to vector<16x32xbf16>
      %50 = vector.extract_strided_slice %49 {offsets = [0, 0], sizes = [16, 8], strides = [1, 1]} : vector<16x32xbf16> to vector<16x8xbf16>
      %51 = vector.extract_strided_slice %49 {offsets = [0, 8], sizes = [16, 8], strides = [1, 1]} : vector<16x32xbf16> to vector<16x8xbf16>
      %52 = vector.extract_strided_slice %49 {offsets = [0, 16], sizes = [16, 8], strides = [1, 1]} : vector<16x32xbf16> to vector<16x8xbf16>
      %53 = vector.extract_strided_slice %49 {offsets = [0, 24], sizes = [16, 8], strides = [1, 1]} : vector<16x32xbf16> to vector<16x8xbf16>
      %54 = tpu.concatenate %50, %51, %52, %53 in 0 : vector<16x8xbf16>, vector<16x8xbf16>, vector<16x8xbf16>, vector<16x8xbf16> -> vector<64x8xbf16>
      %cst_29 = arith.constant dense<0.000000e+00> : vector<64x64xf32>
      %55 = tpu.matmul %42, %48, %cst_29 {dimension_numbers = #tpu.dot_dimension_numbers<[1], [1], [0], [0], [0, 0, 1, 0], [], []>} : vector<64x8xbf16>, vector<64x8xbf16>, vector<64x64xf32> -> vector<64x64xf32>
      %c0_30 = arith.constant 0 : index
      %c0_31 = arith.constant 0 : index
      %56 = vector.load %arg17[%c0_30, %c0_31] : memref<64x64xf32, #tpu.memory_space<vmem>>, vector<64x64xf32>
      %57 = arith.addf %55, %56 : vector<64x64xf32>
      %58 = math.exp %57 : vector<64x64xf32>
      %cst_32 = arith.constant dense<0.000000e+00> : vector<64xf32>
      %59 = vector.multi_reduction <add>, %58, %cst_32 [1] : vector<64x64xf32> to vector<64xf32>
      %60 = vector.shape_cast %59 : vector<64xf32> to vector<64x1xf32>
      %61 = tpu.reciprocal %60 {approx = true} : vector<64x1xf32> -> vector<64x1xf32>
      %62 = vector.broadcast %61 : vector<64x1xf32> to vector<64x64xf32>
      %63 = arith.mulf %58, %62 : vector<64x64xf32>
      %64 = arith.truncf %63 : vector<64x64xf32> to vector<64x64xbf16>
      %cst_33 = arith.constant dense<0.000000e+00> : vector<64x8xf32>
      %65 = tpu.matmul %64, %54, %cst_33 {dimension_numbers = #tpu.dot_dimension_numbers<[1], [0], [0], [1], [0, 0, 1, 1], [], []>} : vector<64x64xbf16>, vector<64x8xbf16>, vector<64x8xf32> -> vector<64x8xf32>
      %66 = vector.extract_strided_slice %65 {offsets = [0, 0], sizes = [16, 8], strides = [1, 1]} : vector<64x8xf32> to vector<16x8xf32>
      %67 = vector.extract_strided_slice %65 {offsets = [16, 0], sizes = [16, 8], strides = [1, 1]} : vector<64x8xf32> to vector<16x8xf32>
      %68 = vector.extract_strided_slice %65 {offsets = [32, 0], sizes = [16, 8], strides = [1, 1]} : vector<64x8xf32> to vector<16x8xf32>
      %69 = vector.extract_strided_slice %65 {offsets = [48, 0], sizes = [16, 8], strides = [1, 1]} : vector<64x8xf32> to vector<16x8xf32>
      %70 = tpu.concatenate %66, %67, %68, %69 in 1 : vector<16x8xf32>, vector<16x8xf32>, vector<16x8xf32>, vector<16x8xf32> -> vector<16x32xf32>
      %71 = arith.truncf %70 : vector<16x32xf32> to vector<16x32xbf16>
      %c0_34 = arith.constant 0 : index
      %c0_35 = arith.constant 0 : index
      %c0_36 = arith.constant 0 : index
      %72 = vector.load %arg7[%c0_34, %c0_35, %c0_36] : memref<1x32x32xbf16, #tpu.memory_space<vmem>>, vector<1x32x32xbf16>
      %73 = vector.shape_cast %72 : vector<1x32x32xbf16> to vector<32x32xbf16>
      %cst_37 = arith.constant dense<0.000000e+00> : vector<16x32xf32>
      %74 = tpu.matmul %71, %73, %cst_37 {dimension_numbers = #tpu.dot_dimension_numbers<[1], [0], [0], [1], [0, 0, 1, 1], [], []>} : vector<16x32xbf16>, vector<32x32xbf16>, vector<16x32xf32> -> vector<16x32xf32>
      %c0_38 = arith.constant 0 : index
      %c0_39 = arith.constant 0 : index
      %c0_40 = arith.constant 0 : index
      %75 = vector.load %arg8[%c0_38, %c0_39, %c0_40] : memref<1x1x32xf32, #tpu.memory_space<vmem>>, vector<1x1x32xf32>
      %76 = vector.shape_cast %75 : vector<1x1x32xf32> to vector<1x32xf32>
      %77 = vector.broadcast %76 : vector<1x32xf32> to vector<16x32xf32>
      %78 = arith.addf %74, %77 : vector<16x32xf32>
      %79 = arith.addf %27, %78 : vector<16x32xf32>
      %c0_41 = arith.constant 0 : index
      %c0_42 = arith.constant 0 : index
      %c0_43 = arith.constant 0 : index
      %80 = vector.load %arg13[%c0_41, %c0_42, %c0_43] : memref<1x1x32xf32, #tpu.memory_space<vmem>>, vector<1x1x32xf32>
      %81 = vector.shape_cast %80 : vector<1x1x32xf32> to vector<1x32xf32>
      %c0_44 = arith.constant 0 : index
      %c0_45 = arith.constant 0 : index
      %c0_46 = arith.constant 0 : index
      %82 = vector.load %arg14[%c0_44, %c0_45, %c0_46] : memref<1x1x32xf32, #tpu.memory_space<vmem>>, vector<1x1x32xf32>
      %83 = vector.shape_cast %82 : vector<1x1x32xf32> to vector<1x32xf32>
      %cst_47 = arith.constant dense<0.000000e+00> : vector<16xf32>
      %84 = vector.multi_reduction <add>, %79, %cst_47 [1] : vector<16x32xf32> to vector<16xf32>
      %85 = vector.shape_cast %84 : vector<16xf32> to vector<16x1xf32>
      %cst_48 = arith.constant 3.200000e+01 : f32
      %86 = vector.broadcast %cst_48 : f32 to vector<16x1xf32>
      %87 = arith.divf %85, %86 : vector<16x1xf32>
      %88 = vector.broadcast %87 : vector<16x1xf32> to vector<16x32xf32>
      %89 = arith.subf %79, %88 : vector<16x32xf32>
      %90 = arith.mulf %89, %89 : vector<16x32xf32>
      %cst_49 = arith.constant dense<0.000000e+00> : vector<16xf32>
      %91 = vector.multi_reduction <add>, %90, %cst_49 [1] : vector<16x32xf32> to vector<16xf32>
      %92 = vector.shape_cast %91 : vector<16xf32> to vector<16x1xf32>
      %cst_50 = arith.constant 3.200000e+01 : f32
      %93 = vector.broadcast %cst_50 : f32 to vector<16x1xf32>
      %94 = arith.divf %92, %93 : vector<16x1xf32>
      %cst_51 = arith.constant 9.99999974E-6 : f32
      %95 = vector.broadcast %cst_51 : f32 to vector<16x1xf32>
      %96 = arith.addf %94, %95 : vector<16x1xf32>
      %97 = math.rsqrt %96 : vector<16x1xf32>
      %98 = vector.broadcast %97 : vector<16x1xf32> to vector<16x32xf32>
      %99 = arith.mulf %89, %98 : vector<16x32xf32>
      %100 = vector.broadcast %81 : vector<1x32xf32> to vector<16x32xf32>
      %101 = arith.mulf %99, %100 : vector<16x32xf32>
      %102 = vector.broadcast %83 : vector<1x32xf32> to vector<16x32xf32>
      %103 = arith.addf %101, %102 : vector<16x32xf32>
      %c0_52 = arith.constant 0 : index
      %c0_53 = arith.constant 0 : index
      %104 = vector.load %arg22[%c0_52, %c0_53] : memref<16x32xf32, #tpu.memory_space<vmem>>, vector<16x32xf32>
      tpu.vector_store %arg22[%c0_52, %c0_53], %103 {strides = array<i32>} : memref<16x32xf32, #tpu.memory_space<vmem>>, vector<16x32xf32>,
      %cst_54 = arith.constant 0.000000e+00 : f32
      %105 = vector.broadcast %cst_54 : f32 to vector<16x32xf32>
      %c0_55 = arith.constant 0 : index
      %c0_56 = arith.constant 0 : index
      %106 = vector.load %arg23[%c0_55, %c0_56] : memref<16x32xf32, #tpu.memory_space<vmem>>, vector<16x32xf32>
      tpu.vector_store %arg23[%c0_55, %c0_56], %105 {strides = array<i32>} : memref<16x32xf32, #tpu.memory_space<vmem>>, vector<16x32xf32>,
    } else {
    }
    %c0 = arith.constant 0 : index
    %c0_1 = arith.constant 0 : index
    %3 = vector.load %arg22[%c0, %c0_1] : memref<16x32xf32, #tpu.memory_space<vmem>>, vector<16x32xf32>
    %4 = arith.truncf %3 : vector<16x32xf32> to vector<16x32xbf16>
    %c0_2 = arith.constant 0 : index
    %c0_3 = arith.constant 0 : index
    %c0_4 = arith.constant 0 : index
    %5 = vector.load %arg9[%c0_2, %c0_3, %c0_4] : memref<1x32x1024xbf16, #tpu.memory_space<vmem>>, vector<1x32x1024xbf16>
    %6 = vector.shape_cast %5 : vector<1x32x1024xbf16> to vector<32x1024xbf16>
    %cst = arith.constant dense<0.000000e+00> : vector<16x1024xf32>
    %7 = tpu.matmul %4, %6, %cst {dimension_numbers = #tpu.dot_dimension_numbers<[1], [0], [0], [1], [0, 0, 1, 1], [], []>} : vector<16x32xbf16>, vector<32x1024xbf16>, vector<16x1024xf32> -> vector<16x1024xf32>
    %c0_5 = arith.constant 0 : index
    %c0_6 = arith.constant 0 : index
    %c0_7 = arith.constant 0 : index
    %8 = vector.load %arg10[%c0_5, %c0_6, %c0_7] : memref<1x1x1024xf32, #tpu.memory_space<vmem>>, vector<1x1x1024xf32>
    %9 = vector.shape_cast %8 : vector<1x1x1024xf32> to vector<1x1024xf32>
    %10 = vector.broadcast %9 : vector<1x1024xf32> to vector<16x1024xf32>
    %11 = arith.addf %7, %10 : vector<16x1024xf32>
    %cst_8 = arith.constant 0.000000e+00 : f32
    %12 = vector.broadcast %cst_8 : f32 to vector<16x1024xf32>
    %13 = arith.maximumf %11, %12 : vector<16x1024xf32>
    %14 = arith.truncf %13 : vector<16x1024xf32> to vector<16x1024xbf16>
    %c0_9 = arith.constant 0 : index
    %c0_10 = arith.constant 0 : index
    %15 = vector.load %arg23[%c0_9, %c0_10] : memref<16x32xf32, #tpu.memory_space<vmem>>, vector<16x32xf32>
    %c0_11 = arith.constant 0 : index
    %c0_12 = arith.constant 0 : index
    %c0_13 = arith.constant 0 : index
    %16 = vector.load %arg11[%c0_11, %c0_12, %c0_13] : memref<1x32x1024xbf16, #tpu.memory_space<vmem>>, vector<1x32x1024xbf16>
    %17 = vector.shape_cast %16 : vector<1x32x1024xbf16> to vector<32x1024xbf16>
    %cst_14 = arith.constant dense<0.000000e+00> : vector<16x32xf32>
    %18 = tpu.matmul %14, %17, %cst_14 {dimension_numbers = #tpu.dot_dimension_numbers<[1], [1], [0], [0], [0, 0, 1, 0], [], []>} : vector<16x1024xbf16>, vector<32x1024xbf16>, vector<16x32xf32> -> vector<16x32xf32>
    %19 = arith.addf %15, %18 : vector<16x32xf32>
    %c0_15 = arith.constant 0 : index
    %c0_16 = arith.constant 0 : index
    %20 = vector.load %arg23[%c0_15, %c0_16] : memref<16x32xf32, #tpu.memory_space<vmem>>, vector<16x32xf32>
    tpu.vector_store %arg23[%c0_15, %c0_16], %19 {strides = array<i32>} : memref<16x32xf32, #tpu.memory_space<vmem>>, vector<16x32xf32>,
    %c1_i32 = arith.constant 1 : i32
    %21 = arith.cmpi eq, %arg1, %c1_i32 : i32
    %22 = arith.extui %21 : i1 to i32
    %c0_i32_17 = arith.constant 0 : i32
    %23 = arith.cmpi ne, %22, %c0_i32_17 : i32
    scf.if %23 {
      %c0_18 = arith.constant 0 : index
      %c0_19 = arith.constant 0 : index
      %24 = vector.load %arg22[%c0_18, %c0_19] : memref<16x32xf32, #tpu.memory_space<vmem>>, vector<16x32xf32>
      %c0_20 = arith.constant 0 : index
      %c0_21 = arith.constant 0 : index
      %25 = vector.load %arg23[%c0_20, %c0_21] : memref<16x32xf32, #tpu.memory_space<vmem>>, vector<16x32xf32>
      %26 = arith.addf %24, %25 : vector<16x32xf32>
      %c0_22 = arith.constant 0 : index
      %c0_23 = arith.constant 0 : index
      %c0_24 = arith.constant 0 : index
      %27 = vector.load %arg12[%c0_22, %c0_23, %c0_24] : memref<1x1x32xf32, #tpu.memory_space<vmem>>, vector<1x1x32xf32>
      %28 = vector.shape_cast %27 : vector<1x1x32xf32> to vector<1x32xf32>
      %29 = vector.broadcast %28 : vector<1x32xf32> to vector<16x32xf32>
      %30 = arith.addf %26, %29 : vector<16x32xf32>
      %c0_25 = arith.constant 0 : index
      %c0_26 = arith.constant 0 : index
      %c0_27 = arith.constant 0 : index
      %31 = vector.load %arg15[%c0_25, %c0_26, %c0_27] : memref<1x1x32xf32, #tpu.memory_space<vmem>>, vector<1x1x32xf32>
      %32 = vector.shape_cast %31 : vector<1x1x32xf32> to vector<1x32xf32>
      %c0_28 = arith.constant 0 : index
      %c0_29 = arith.constant 0 : index
      %c0_30 = arith.constant 0 : index
      %33 = vector.load %arg16[%c0_28, %c0_29, %c0_30] : memref<1x1x32xf32, #tpu.memory_space<vmem>>, vector<1x1x32xf32>
      %34 = vector.shape_cast %33 : vector<1x1x32xf32> to vector<1x32xf32>
      %cst_31 = arith.constant dense<0.000000e+00> : vector<16xf32>
      %35 = vector.multi_reduction <add>, %30, %cst_31 [1] : vector<16x32xf32> to vector<16xf32>
      %36 = vector.shape_cast %35 : vector<16xf32> to vector<16x1xf32>
      %cst_32 = arith.constant 3.200000e+01 : f32
      %37 = vector.broadcast %cst_32 : f32 to vector<16x1xf32>
      %38 = arith.divf %36, %37 : vector<16x1xf32>
      %39 = vector.broadcast %38 : vector<16x1xf32> to vector<16x32xf32>
      %40 = arith.subf %30, %39 : vector<16x32xf32>
      %41 = arith.mulf %40, %40 : vector<16x32xf32>
      %cst_33 = arith.constant dense<0.000000e+00> : vector<16xf32>
      %42 = vector.multi_reduction <add>, %41, %cst_33 [1] : vector<16x32xf32> to vector<16xf32>
      %43 = vector.shape_cast %42 : vector<16xf32> to vector<16x1xf32>
      %cst_34 = arith.constant 3.200000e+01 : f32
      %44 = vector.broadcast %cst_34 : f32 to vector<16x1xf32>
      %45 = arith.divf %43, %44 : vector<16x1xf32>
      %cst_35 = arith.constant 9.99999974E-6 : f32
      %46 = vector.broadcast %cst_35 : f32 to vector<16x1xf32>
      %47 = arith.addf %45, %46 : vector<16x1xf32>
      %48 = math.rsqrt %47 : vector<16x1xf32>
      %49 = vector.broadcast %48 : vector<16x1xf32> to vector<16x32xf32>
      %50 = arith.mulf %40, %49 : vector<16x32xf32>
      %51 = vector.broadcast %32 : vector<1x32xf32> to vector<16x32xf32>
      %52 = arith.mulf %50, %51 : vector<16x32xf32>
      %53 = vector.broadcast %34 : vector<1x32xf32> to vector<16x32xf32>
      %54 = arith.addf %52, %53 : vector<16x32xf32>
      %c0_36 = arith.constant 0 : index
      %c0_37 = arith.constant 0 : index
      %55 = vector.load %arg22[%c0_36, %c0_37] : memref<16x32xf32, #tpu.memory_space<vmem>>, vector<16x32xf32>
      tpu.vector_store %arg22[%c0_36, %c0_37], %54 {strides = array<i32>} : memref<16x32xf32, #tpu.memory_space<vmem>>, vector<16x32xf32>,
      %c1_i32_38 = arith.constant 1 : i32
      %56 = arith.cmpi eq, %arg0, %c1_i32_38 : i32
      %57 = arith.extui %56 : i1 to i32
      %c0_i32_39 = arith.constant 0 : i32
      %58 = arith.cmpi ne, %57, %c0_i32_39 : i32
      scf.if %58 {
        %c0_40 = arith.constant 0 : index
        %c0_41 = arith.constant 0 : index
        %59 = vector.load %arg18[%c0_40, %c0_41] : memref<2x16xf32, #tpu.memory_space<vmem>>, vector<2x16xf32>
        %cst_42 = arith.constant dense<0.000000e+00> : vector<2x32xf32>
        %60 = tpu.matmul %59, %54, %cst_42 {dimension_numbers = #tpu.dot_dimension_numbers<[1], [0], [0], [1], [0, 0, 1, 1], [], []>} : vector<2x16xf32>, vector<16x32xf32>, vector<2x32xf32> -> vector<2x32xf32>
        %c0_43 = arith.constant 0 : index
        %c0_44 = arith.constant 0 : index
        %61 = vector.load %arg19[%c0_43, %c0_44] : memref<32x32xf32, #tpu.memory_space<vmem>>, vector<32x32xf32>
        %cst_45 = arith.constant dense<0.000000e+00> : vector<2x32xf32>
        %62 = tpu.matmul %60, %61, %cst_45 {dimension_numbers = #tpu.dot_dimension_numbers<[1], [0], [0], [1], [0, 0, 1, 1], [], []>} : vector<2x32xf32>, vector<32x32xf32>, vector<2x32xf32> -> vector<2x32xf32>
        %c0_46 = arith.constant 0 : index
        %c0_47 = arith.constant 0 : index
        %63 = vector.load %arg20[%c0_46, %c0_47] : memref<1x32xf32, #tpu.memory_space<vmem>>, vector<1x32xf32>
        %64 = vector.broadcast %63 : vector<1x32xf32> to vector<2x32xf32>
        %65 = arith.addf %62, %64 : vector<2x32xf32>
        %c0_48 = arith.constant 0 : index
        %c0_49 = arith.constant 0 : index
        %66 = vector.load %arg21[%c0_48, %c0_49] : memref<2x32xf32, #tpu.memory_space<vmem>>, vector<2x32xf32>
        tpu.vector_store %arg21[%c0_48, %c0_49], %65 {strides = array<i32>} : memref<2x32xf32, #tpu.memory_space<vmem>>, vector<2x32xf32>,
      } else {
      }
    } else {
    }
    return
  }
  func.func @transform_0(%arg0: i32, %arg1: i32) -> (i32, i32) {
    %c0_i32 = arith.constant 0 : i32
    %c0_i32_0 = arith.constant 0 : i32
    %c0_i32_1 = arith.constant 0 : i32
    return %c0_i32, %c0_i32_0 : i32, i32
  }
  func.func @transform_1(%arg0: i32, %arg1: i32) -> (i32, i32) {
    %c0_i32 = arith.constant 0 : i32
    %c0_i32_0 = arith.constant 0 : i32
    %c0_i32_1 = arith.constant 0 : i32
    return %c0_i32, %c0_i32_0 : i32, i32
  }
  func.func @transform_2(%arg0: i32, %arg1: i32) -> (i32, i32) {
    %c0_i32 = arith.constant 0 : i32
    %c0_i32_0 = arith.constant 0 : i32
    %c0_i32_1 = arith.constant 0 : i32
    return %c0_i32, %c0_i32_0 : i32, i32
  }
  func.func @transform_3(%arg0: i32, %arg1: i32) -> (i32, i32, i32) {
    %c0_i32 = arith.constant 0 : i32
    %c0_i32_0 = arith.constant 0 : i32
    %c0_i32_1 = arith.constant 0 : i32
    return %arg0, %c0_i32, %c0_i32_0 : i32, i32, i32
  }
  func.func @transform_4(%arg0: i32, %arg1: i32) -> (i32, i32, i32) {
    %c0_i32 = arith.constant 0 : i32
    %c0_i32_0 = arith.constant 0 : i32
    %c0_i32_1 = arith.constant 0 : i32
    return %arg0, %c0_i32, %c0_i32_0 : i32, i32, i32
  }
  func.func @transform_5(%arg0: i32, %arg1: i32) -> (i32, i32, i32) {
    %c0_i32 = arith.constant 0 : i32
    %c0_i32_0 = arith.constant 0 : i32
    %c0_i32_1 = arith.constant 0 : i32
    return %arg0, %c0_i32, %c0_i32_0 : i32, i32, i32
  }
  func.func @transform_6(%arg0: i32, %arg1: i32) -> (i32, i32, i32) {
    %c0_i32 = arith.constant 0 : i32
    %c0_i32_0 = arith.constant 0 : i32
    %c0_i32_1 = arith.constant 0 : i32
    return %arg0, %c0_i32, %c0_i32_0 : i32, i32, i32
  }
  func.func @transform_7(%arg0: i32, %arg1: i32) -> (i32, i32, i32) {
    %c0_i32 = arith.constant 0 : i32
    %c0_i32_0 = arith.constant 0 : i32
    return %arg0, %c0_i32, %arg1 : i32, i32, i32
  }
  func.func @transform_8(%arg0: i32, %arg1: i32) -> (i32, i32, i32) {
    %c0_i32 = arith.constant 0 : i32
    %c0_i32_0 = arith.constant 0 : i32
    return %arg0, %c0_i32, %arg1 : i32, i32, i32
  }
  func.func @transform_9(%arg0: i32, %arg1: i32) -> (i32, i32, i32) {
    %c0_i32 = arith.constant 0 : i32
    %c0_i32_0 = arith.constant 0 : i32
    return %arg0, %c0_i32, %arg1 : i32, i32, i32
  }
  func.func @transform_10(%arg0: i32, %arg1: i32) -> (i32, i32, i32) {
    %c0_i32 = arith.constant 0 : i32
    %c0_i32_0 = arith.constant 0 : i32
    %c0_i32_1 = arith.constant 0 : i32
    return %arg0, %c0_i32, %c0_i32_0 : i32, i32, i32
  }
  func.func @transform_11(%arg0: i32, %arg1: i32) -> (i32, i32, i32) {
    %c0_i32 = arith.constant 0 : i32
    %c0_i32_0 = arith.constant 0 : i32
    %c0_i32_1 = arith.constant 0 : i32
    return %arg0, %c0_i32, %c0_i32_0 : i32, i32, i32
  }
  func.func @transform_12(%arg0: i32, %arg1: i32) -> (i32, i32, i32) {
    %c0_i32 = arith.constant 0 : i32
    %c0_i32_0 = arith.constant 0 : i32
    %c0_i32_1 = arith.constant 0 : i32
    return %arg0, %c0_i32, %c0_i32_0 : i32, i32, i32
  }
  func.func @transform_13(%arg0: i32, %arg1: i32) -> (i32, i32, i32) {
    %c0_i32 = arith.constant 0 : i32
    %c0_i32_0 = arith.constant 0 : i32
    %c0_i32_1 = arith.constant 0 : i32
    return %arg0, %c0_i32, %c0_i32_0 : i32, i32, i32
  }
  func.func @transform_14(%arg0: i32, %arg1: i32) -> (i32, i32, i32) {
    %c0_i32 = arith.constant 0 : i32
    %c0_i32_0 = arith.constant 0 : i32
    %c0_i32_1 = arith.constant 0 : i32
    return %arg0, %c0_i32, %c0_i32_0 : i32, i32, i32
  }
  func.func @transform_15(%arg0: i32, %arg1: i32) -> (i32, i32) {
    %c0_i32 = arith.constant 0 : i32
    %c0_i32_0 = arith.constant 0 : i32
    %c0_i32_1 = arith.constant 0 : i32
    return %c0_i32, %c0_i32_0 : i32, i32
  }
  func.func @transform_16(%arg0: i32, %arg1: i32) -> (i32, i32) {
    %c0_i32 = arith.constant 0 : i32
    %c0_i32_0 = arith.constant 0 : i32
    %c0_i32_1 = arith.constant 0 : i32
    return %c0_i32, %c0_i32_0 : i32, i32
  }
  func.func @transform_17(%arg0: i32, %arg1: i32) -> (i32, i32) {
    %c0_i32 = arith.constant 0 : i32
    %c0_i32_0 = arith.constant 0 : i32
    %c0_i32_1 = arith.constant 0 : i32
    return %c0_i32, %c0_i32_0 : i32, i32
  }
  func.func @transform_18(%arg0: i32, %arg1: i32) -> (i32, i32) {
    %c0_i32 = arith.constant 0 : i32
    %c0_i32_0 = arith.constant 0 : i32
    %c0_i32_1 = arith.constant 0 : i32
    return %c0_i32, %c0_i32_0 : i32, i32
  }
  func.func @transform_19(%arg0: i32, %arg1: i32) -> (i32, i32) {
    %c0_i32 = arith.constant 0 : i32
    %c0_i32_0 = arith.constant 0 : i32
    %c0_i32_1 = arith.constant 0 : i32
    return %c0_i32, %c0_i32_0 : i32, i32
  }
}

</mosaic_0001>

<llo_original>
// kernel: transformer_vae_encoder.1
$region0: #{transformer_vae_encoder.1}
  #allocation0 [shape = 'u32[]', space=smem, size = 0x4, offset = 0x4, fixed_abs, tag = 'smem constant byte address 0x4 - core index']
  #allocation1 [shape = 'u32[144,128]{1,0:T(1,128)}', space=vmem, size = 0x12000, scoped, tag = 'internal scratch']
  #allocation2 [shape = 'f32[16,32]{1,0:T(8,128)}', space=vmem, size = 0x2000, scoped, tag = 'scratch operand']
  #allocation3 [shape = 'f32[16,32]{1,0:T(8,128)}', space=vmem, size = 0x2000, scoped, tag = 'scratch operand']
  %s0 = inlined_call_operand.vmem [shape: f32[16,4], index: 0, kind: input, shape index: {}]
  %s1 = inlined_call_operand.vmem [shape: f32[16,32], index: 1, kind: input, shape index: {}]
  %s2 = inlined_call_operand.hbm [shape: f32[4,32], index: 2, kind: input, shape index: {}]
  %s3 = inlined_call_operand.vmem [shape: bf16[2,32,96], index: 3, kind: input, shape index: {}]
  %s4 = inlined_call_operand.hbm [shape: f32[2,1,96], index: 4, kind: input, shape index: {}]
  %s5 = inlined_call_operand.vmem [shape: bf16[2,32,32], index: 5, kind: input, shape index: {}]
  %s6 = inlined_call_operand.vmem [shape: f32[2,1,32], index: 6, kind: input, shape index: {}]
  %s7 = inlined_call_operand.hbm [shape: bf16[2,32,2048], index: 7, kind: input, shape index: {}]
  %s8 = inlined_call_operand.hbm [shape: f32[2,1,2048], index: 8, kind: input, shape index: {}]
  %s9 = inlined_call_operand.hbm [shape: bf16[2,32,2048], index: 9, kind: input, shape index: {}]
  %s10 = inlined_call_operand.hbm [shape: f32[2,1,32], index: 10, kind: input, shape index: {}]
  %s11 = inlined_call_operand.hbm [shape: f32[2,1,32], index: 11, kind: input, shape index: {}]
  %s12 = inlined_call_operand.hbm [shape: f32[2,1,32], index: 12, kind: input, shape index: {}]
  %s13 = inlined_call_operand.hbm [shape: f32[2,1,32], index: 13, kind: input, shape index: {}]
  %s14 = inlined_call_operand.hbm [shape: f32[2,1,32], index: 14, kind: input, shape index: {}]
  %s15 = inlined_call_operand.hbm [shape: f32[64,64], index: 15, kind: input, shape index: {}]
  %s16 = inlined_call_operand.vmem [shape: f32[2,16], index: 16, kind: input, shape index: {}]
  %s17 = inlined_call_operand.hbm [shape: f32[32,32], index: 17, kind: input, shape index: {}]
  %s18 = inlined_call_operand.hbm [shape: f32[1,32], index: 18, kind: input, shape index: {}]
  %s19 = inlined_call_operand.vmem [shape: f32[2,32], index: 19, kind: output, shape index: {}]
  %s20 = sld [smem:[#allocation0]]
  $region177: #{transformer_vae_encoder.1} parent=0
    _
  %s22 = ssub.s32 1, %s20
  %s23 = scalar_select 0, %s22, %s20
  $region1: #{transformer_vae_encoder.1} parent=0
    #allocation4 [shape = 'u8[2048]{0}', space=vmem, size = 0x800, scoped, tag = 'input window, operand 2, single buffered']
    #allocation5 [shape = 's32[2]{0}', space=sflag, size = 0x8, scoped, tag = 'scoped memory for transformer_vae_encoder.1']
    #allocation6 [shape = 'u8[1024]{0}', space=vmem, size = 0x400, scoped, tag = 'input window, operand 4']
    #allocation7 [shape = 's32[2]{0}', space=sflag, size = 0x8, scoped, tag = 'scoped memory for transformer_vae_encoder.1']
    #allocation8 [shape = 'u8[131072]{0}', space=vmem, size = 0x20000, scoped, tag = 'input window, operand 7']
    #allocation9 [shape = 'u8[8192]{0}', space=vmem, size = 0x2000, scoped, tag = 'input window, operand 8']
    #allocation10 [shape = 's32[2]{0}', space=sflag, size = 0x8, scoped, tag = 'scoped memory for transformer_vae_encoder.1']
    #allocation11 [shape = 'u8[131072]{0}', space=vmem, size = 0x20000, scoped, tag = 'input window, operand 9']
    #allocation12 [shape = 'u8[1024]{0}', space=vmem, size = 0x400, scoped, tag = 'input window, operand 10']
    #allocation13 [shape = 's32[2]{0}', space=sflag, size = 0x8, scoped, tag = 'scoped memory for transformer_vae_encoder.1']
    #allocation14 [shape = 'u8[1024]{0}', space=vmem, size = 0x400, scoped, tag = 'input window, operand 11']
    #allocation15 [shape = 'u8[1024]{0}', space=vmem, size = 0x400, scoped, tag = 'input window, operand 12']
    #allocation16 [shape = 's32[2]{0}', space=sflag, size = 0x8, scoped, tag = 'scoped memory for transformer_vae_encoder.1']
    #allocation17 [shape = 'u8[1024]{0}', space=vmem, size = 0x400, scoped, tag = 'input window, operand 13']
    #allocation18 [shape = 'u8[1024]{0}', space=vmem, size = 0x400, scoped, tag = 'input window, operand 14']
    #allocation19 [shape = 's32[2]{0}', space=sflag, size = 0x8, scoped, tag = 'scoped memory for transformer_vae_encoder.1']
    #allocation20 [shape = 'u8[32768]{0}', space=vmem, size = 0x8000, scoped, tag = 'input window, operand 15, single buffered']
    #allocation21 [shape = 'u8[16384]{0}', space=vmem, size = 0x4000, scoped, tag = 'input window, operand 17, single buffered']
    #allocation22 [shape = 's32[1]{0}', space=sflag, size = 0x4, scoped, tag = 'scoped memory for transformer_vae_encoder.1']
    #allocation23 [shape = 'u8[512]{0}', space=vmem, size = 0x400, scoped, tag = 'input window, operand 18, single buffered']
    %24 = vsyncpa [#allocation5], 0
    %25 = vsyncpa [#allocation7], 0
    %s26 = scalar_lea.sflag [#allocation7], 1
    %27 = vsyncpa %s26, 0
    %28 = vsyncpa [#allocation10], 0
    %s29 = scalar_lea.sflag [#allocation10], 1
    %30 = vsyncpa %s29, 0
    %31 = vsyncpa [#allocation13], 0
    %s32 = scalar_lea.sflag [#allocation13], 1
    %33 = vsyncpa %s32, 0
    %34 = vsyncpa [#allocation16], 0
    %s35 = scalar_lea.sflag [#allocation16], 1
    %36 = vsyncpa %s35, 0
    %37 = vsyncpa [#allocation19], 0
    %s38 = scalar_lea.sflag [#allocation19], 1
    %39 = vsyncpa %s38, 0
    %40 = vsyncpa [#allocation22], 0
    loop: start=0, step=1, limit=6
    $region2: #{transformer_vae_encoder.1} parent=1 // loop_pre_header
      _
    $region3: #{transformer_vae_encoder.1} parent=1 // loop_header
      %s42 = sphi 0, %s46
      %p43 = scmp.ge.s32.totalorder %s42, 6
      %s49 = sphi 0, %s61
      %s50 = sphi 0, %s57
      %s51 = sphi 0, %s49
      %s52 = sphi 0, %s50
      %s53 = sphi 0, %s51
      %s54 = sphi 0, %s52
      %s62 = sphi 0, %s62
      %s64 = sphi 0, %s62
      %s65 = sphi 0, %s64
      %s79 = sphi 0, %s65
      %s83 = sphi 0, %s83
      %s85 = sphi 0, %s83
      %s86 = sphi 0, %s85
      %s100 = sphi 0, %s86
      %s104 = sphi 0, %s104
      %s106 = sphi 0, %s104
      %s107 = sphi 0, %s106
      %s121 = sphi 0, %s107
      %s127 = sphi 0, %s129
      %s130 = sphi 0, %s127
      %s131 = sphi 0, %s130
      %s147 = sphi 0, %s131
      %s153 = sphi 0, %s155
      %s156 = sphi 0, %s153
      %s157 = sphi 0, %s156
      %s173 = sphi 0, %s157
      %s179 = sphi 0, %s181
      %s182 = sphi 0, %s179
      %s183 = sphi 0, %s182
      %s199 = sphi 0, %s183
      %s205 = sphi 0, %s207
      %s208 = sphi 0, %s205
      %s209 = sphi 0, %s208
      %s225 = sphi 0, %s209
      %s233 = sphi 0, %s235
      %s236 = sphi 0, %s233
      %s237 = sphi 0, %s236
      %s253 = sphi 0, %s237
      %s261 = sphi 0, %s263
      %s264 = sphi 0, %s261
      %s265 = sphi 0, %s264
      %s281 = sphi 0, %s265
      %s289 = sphi 0, %s291
      %s292 = sphi 0, %s289
      %s293 = sphi 0, %s292
      %s309 = sphi 0, %s293
      %s315 = sphi 0, %s317
      %s318 = sphi 0, %s315
      %s319 = sphi 0, %s318
      %s335 = sphi 0, %s319
      %s341 = sphi 0, %s343
      %s344 = sphi 0, %s341
      %s345 = sphi 0, %s344
      %s361 = sphi 0, %s345
      %s367 = sphi 0, %s369
      %s370 = sphi 0, %s367
      %s371 = sphi 0, %s370
      %s387 = sphi 0, %s371
      %s393 = sphi 0, %s395
      %s396 = sphi 0, %s393
      %s397 = sphi 0, %s396
      %s413 = sphi 0, %s397
      %s419 = sphi 0, %s421
      %s422 = sphi 0, %s419
      %s423 = sphi 0, %s422
      %s439 = sphi 0, %s423
      %s443 = sphi 0, %s443
      %s445 = sphi 0, %s443
      %s446 = sphi 0, %s445
      %s460 = sphi 0, %s446
      %s464 = sphi 0, %s464
      %s466 = sphi 0, %s464
      %s467 = sphi 0, %s466
      %s481 = sphi 0, %s467
      %s485 = sphi 0, %s485
      %s487 = sphi 0, %s485
      %s488 = sphi 0, %s487
      %s502 = sphi 0, %s488
      %s506 = sphi 0, %s506
      %s508 = sphi 0, %s506
      %s509 = sphi 0, %s508
      %s523 = sphi 0, %s509
      %s527 = sphi 0, %s527
      %s529 = sphi 0, %s527
      %s530 = sphi 0, %s529
      %s544 = sphi 0, %s530
    $region4: #{transformer_vae_encoder.1} parent=1 // loop_header_branch
      %45 = sbr.rel (%p43) target = $region8
    $region5: #{transformer_vae_encoder.1} parent=1 // loop_body
      %s47 = ssub.s32 %s42, 1
      %s48 = ssub.s32 %s42, 2
      %s55 = sadd.s32 1, %s50
      %p56 = scmp.ge.s32.totalorder %s55, 2
      %s57 = scalar_select %p56, 0, %s55
      %s58 = sadd.s32 1, %s49
      %s59 = scalar_select %p56, %s58, %s49
      %p60 = scmp.ge.s32.totalorder %s59, 2
      %s61 = scalar_select %p60, 0, %s59
      %s63 = sadd.s32 %s62, 1
      %p66 = scmp.eq.s32.totalorder %s42, 3
      %p67 = scmp.ne.s32.totalorder %s62, %s64
      %p68 = scmp.eq.s32.totalorder %s42, 0
      %p69 = por %p67, %p68
      %p70 = scmp.ne.s32.totalorder %s62, %s64
      %p71 = scmp.eq.s32.totalorder %s47, 3
      %p72 = por %p70, %p71
      %p73 = scmp.ne.s32.totalorder %s64, %s65
      %p74 = scmp.eq.s32.totalorder %s47, 0
      %p75 = por %p73, %p74
      %p76 = scmp.ne.s32.totalorder %s64, %s65
      %p77 = scmp.eq.s32.totalorder %s48, 3
      %p78 = por %p76, %p77
      %p80 = scmp.ne.s32.totalorder %s65, %s79
      %p81 = scmp.eq.s32.totalorder %s48, 0
      %p82 = por %p80, %p81
      %s84 = sadd.s32 %s83, 1
      %p87 = scmp.eq.s32.totalorder %s42, 3
      %p88 = scmp.ne.s32.totalorder %s83, %s85
      %p89 = scmp.eq.s32.totalorder %s42, 0
      %p90 = por %p88, %p89
      %p91 = scmp.ne.s32.totalorder %s83, %s85
      %p92 = scmp.eq.s32.totalorder %s47, 3
      %p93 = por %p91, %p92
      %p94 = scmp.ne.s32.totalorder %s85, %s86
      %p95 = scmp.eq.s32.totalorder %s47, 0
      %p96 = por %p94, %p95
      %p97 = scmp.ne.s32.totalorder %s85, %s86
      %p98 = scmp.eq.s32.totalorder %s48, 3
      %p99 = por %p97, %p98
      %p101 = scmp.ne.s32.totalorder %s86, %s100
      %p102 = scmp.eq.s32.totalorder %s48, 0
      %p103 = por %p101, %p102
      %s105 = sadd.s32 %s104, 1
      %p108 = scmp.eq.s32.totalorder %s42, 3
      %p109 = scmp.ne.s32.totalorder %s104, %s106
      %p110 = scmp.eq.s32.totalorder %s42, 0
      %p111 = por %p109, %p110
      %p112 = scmp.ne.s32.totalorder %s104, %s106
      %p113 = scmp.eq.s32.totalorder %s47, 3
      %p114 = por %p112, %p113
      %p115 = scmp.ne.s32.totalorder %s106, %s107
      %p116 = scmp.eq.s32.totalorder %s47, 0
      %p117 = por %p115, %p116
      %p118 = scmp.ne.s32.totalorder %s106, %s107
      %p119 = scmp.eq.s32.totalorder %s48, 3
      %p120 = por %p118, %p119
      %p122 = scmp.ne.s32.totalorder %s107, %s121
      %p123 = scmp.eq.s32.totalorder %s48, 0
      %p124 = por %p122, %p123
      %s125 = ssub.s32 %s49, %s61
      %p126 = scmp.eq.s32.totalorder %s125, 0
      %s128 = sadd.s32 %s127, 1
      %s129 = scalar_select %p126, %s127, %s128
      %p132 = pneg %p126
      %p133 = scmp.eq.s32.totalorder %s42, 3
      %p134 = por %p132, %p133
      %p135 = scmp.ne.s32.totalorder %s127, %s130
      %p136 = scmp.eq.s32.totalorder %s42, 0
      %p137 = por %p135, %p136
      %p138 = scmp.ne.s32.totalorder %s127, %s130
      %p139 = scmp.eq.s32.totalorder %s47, 3
      %p140 = por %p138, %p139
      %p141 = scmp.ne.s32.totalorder %s130, %s131
      %p142 = scmp.eq.s32.totalorder %s47, 0
      %p143 = por %p141, %p142
      %p144 = scmp.ne.s32.totalorder %s130, %s131
      %p145 = scmp.eq.s32.totalorder %s48, 3
      %p146 = por %p144, %p145
      %p148 = scmp.ne.s32.totalorder %s131, %s147
      %p149 = scmp.eq.s32.totalorder %s48, 0
      %p150 = por %p148, %p149
      %s151 = ssub.s32 %s49, %s61
      %p152 = scmp.eq.s32.totalorder %s151, 0
      %s154 = sadd.s32 %s153, 1
      %s155 = scalar_select %p152, %s153, %s154
      %p158 = pneg %p152
      %p159 = scmp.eq.s32.totalorder %s42, 3
      %p160 = por %p158, %p159
      %p161 = scmp.ne.s32.totalorder %s153, %s156
      %p162 = scmp.eq.s32.totalorder %s42, 0
      %p163 = por %p161, %p162
      %p164 = scmp.ne.s32.totalorder %s153, %s156
      %p165 = scmp.eq.s32.totalorder %s47, 3
      %p166 = por %p164, %p165
      %p167 = scmp.ne.s32.totalorder %s156, %s157
      %p168 = scmp.eq.s32.totalorder %s47, 0
      %p169 = por %p167, %p168
      %p170 = scmp.ne.s32.totalorder %s156, %s157
      %p171 = scmp.eq.s32.totalorder %s48, 3
      %p172 = por %p170, %p171
      %p174 = scmp.ne.s32.totalorder %s157, %s173
      %p175 = scmp.eq.s32.totalorder %s48, 0
      %p176 = por %p174, %p175
      %s177 = ssub.s32 %s49, %s61
      %p178 = scmp.eq.s32.totalorder %s177, 0
      %s180 = sadd.s32 %s179, 1
      %s181 = scalar_select %p178, %s179, %s180
      %p184 = pneg %p178
      %p185 = scmp.eq.s32.totalorder %s42, 3
      %p186 = por %p184, %p185
      %p187 = scmp.ne.s32.totalorder %s179, %s182
      %p188 = scmp.eq.s32.totalorder %s42, 0
      %p189 = por %p187, %p188
      %p190 = scmp.ne.s32.totalorder %s179, %s182
      %p191 = scmp.eq.s32.totalorder %s47, 3
      %p192 = por %p190, %p191
      %p193 = scmp.ne.s32.totalorder %s182, %s183
      %p194 = scmp.eq.s32.totalorder %s47, 0
      %p195 = por %p193, %p194
      %p196 = scmp.ne.s32.totalorder %s182, %s183
      %p197 = scmp.eq.s32.totalorder %s48, 3
      %p198 = por %p196, %p197
      %p200 = scmp.ne.s32.totalorder %s183, %s199
      %p201 = scmp.eq.s32.totalorder %s48, 0
      %p202 = por %p200, %p201
      %s203 = ssub.s32 %s49, %s61
      %p204 = scmp.eq.s32.totalorder %s203, 0
      %s206 = sadd.s32 %s205, 1
      %s207 = scalar_select %p204, %s205, %s206
      %p210 = pneg %p204
      %p211 = scmp.eq.s32.totalorder %s42, 3
      %p212 = por %p210, %p211
      %p213 = scmp.ne.s32.totalorder %s205, %s208
      %p214 = scmp.eq.s32.totalorder %s42, 0
      %p215 = por %p213, %p214
      %p216 = scmp.ne.s32.totalorder %s205, %s208
      %p217 = scmp.eq.s32.totalorder %s47, 3
      %p218 = por %p216, %p217
      %p219 = scmp.ne.s32.totalorder %s208, %s209
      %p220 = scmp.eq.s32.totalorder %s47, 0
      %p221 = por %p219, %p220
      %p222 = scmp.ne.s32.totalorder %s208, %s209
      %p223 = scmp.eq.s32.totalorder %s48, 3
      %p224 = por %p222, %p223
      %p226 = scmp.ne.s32.totalorder %s209, %s225
      %p227 = scmp.eq.s32.totalorder %s48, 0
      %p228 = por %p226, %p227
      %s229 = ssub.s32 %s49, %s61
      %s230 = ssub.s32 %s50, %s57
      %s231 = sor.u32 %s229, %s230
      %p232 = scmp.eq.s32.totalorder %s231, 0
      %s234 = sadd.s32 %s233, 1
      %s235 = scalar_select %p232, %s233, %s234
      %p238 = pneg %p232
      %p239 = scmp.eq.s32.totalorder %s42, 3
      %p240 = por %p238, %p239
      %p241 = scmp.ne.s32.totalorder %s233, %s236
      %p242 = scmp.eq.s32.totalorder %s42, 0
      %p243 = por %p241, %p242
      %p244 = scmp.ne.s32.totalorder %s233, %s236
      %p245 = scmp.eq.s32.totalorder %s47, 3
      %p246 = por %p244, %p245
      %p247 = scmp.ne.s32.totalorder %s236, %s237
      %p248 = scmp.eq.s32.totalorder %s47, 0
      %p249 = por %p247, %p248
      %p250 = scmp.ne.s32.totalorder %s236, %s237
      %p251 = scmp.eq.s32.totalorder %s48, 3
      %p252 = por %p250, %p251
      %p254 = scmp.ne.s32.totalorder %s237, %s253
      %p255 = scmp.eq.s32.totalorder %s48, 0
      %p256 = por %p254, %p255
      %s257 = ssub.s32 %s49, %s61
      %s258 = ssub.s32 %s50, %s57
      %s259 = sor.u32 %s257, %s258
      %p260 = scmp.eq.s32.totalorder %s259, 0
      %s262 = sadd.s32 %s261, 1
      %s263 = scalar_select %p260, %s261, %s262
      %p266 = pneg %p260
      %p267 = scmp.eq.s32.totalorder %s42, 3
      %p268 = por %p266, %p267
      %p269 = scmp.ne.s32.totalorder %s261, %s264
      %p270 = scmp.eq.s32.totalorder %s42, 0
      %p271 = por %p269, %p270
      %p272 = scmp.ne.s32.totalorder %s261, %s264
      %p273 = scmp.eq.s32.totalorder %s47, 3
      %p274 = por %p272, %p273
      %p275 = scmp.ne.s32.totalorder %s264, %s265
      %p276 = scmp.eq.s32.totalorder %s47, 0
      %p277 = por %p275, %p276
      %p278 = scmp.ne.s32.totalorder %s264, %s265
      %p279 = scmp.eq.s32.totalorder %s48, 3
      %p280 = por %p278, %p279
      %p282 = scmp.ne.s32.totalorder %s265, %s281
      %p283 = scmp.eq.s32.totalorder %s48, 0
      %p284 = por %p282, %p283
      %s285 = ssub.s32 %s49, %s61
      %s286 = ssub.s32 %s50, %s57
      %s287 = sor.u32 %s285, %s286
      %p288 = scmp.eq.s32.totalorder %s287, 0
      %s290 = sadd.s32 %s289, 1
      %s291 = scalar_select %p288, %s289, %s290
      %p294 = pneg %p288
      %p295 = scmp.eq.s32.totalorder %s42, 3
      %p296 = por %p294, %p295
      %p297 = scmp.ne.s32.totalorder %s289, %s292
      %p298 = scmp.eq.s32.totalorder %s42, 0
      %p299 = por %p297, %p298
      %p300 = scmp.ne.s32.totalorder %s289, %s292
      %p301 = scmp.eq.s32.totalorder %s47, 3
      %p302 = por %p300, %p301
      %p303 = scmp.ne.s32.totalorder %s292, %s293
      %p304 = scmp.eq.s32.totalorder %s47, 0
      %p305 = por %p303, %p304
      %p306 = scmp.ne.s32.totalorder %s292, %s293
      %p307 = scmp.eq.s32.totalorder %s48, 3
      %p308 = por %p306, %p307
      %p310 = scmp.ne.s32.totalorder %s293, %s309
      %p311 = scmp.eq.s32.totalorder %s48, 0
      %p312 = por %p310, %p311
      %s313 = ssub.s32 %s49, %s61
      %p314 = scmp.eq.s32.totalorder %s313, 0
      %s316 = sadd.s32 %s315, 1
      %s317 = scalar_select %p314, %s315, %s316
      %p320 = pneg %p314
      %p321 = scmp.eq.s32.totalorder %s42, 3
      %p322 = por %p320, %p321
      %p323 = scmp.ne.s32.totalorder %s315, %s318
      %p324 = scmp.eq.s32.totalorder %s42, 0
      %p325 = por %p323, %p324
      %p326 = scmp.ne.s32.totalorder %s315, %s318
      %p327 = scmp.eq.s32.totalorder %s47, 3
      %p328 = por %p326, %p327
      %p329 = scmp.ne.s32.totalorder %s318, %s319
      %p330 = scmp.eq.s32.totalorder %s47, 0
      %p331 = por %p329, %p330
      %p332 = scmp.ne.s32.totalorder %s318, %s319
      %p333 = scmp.eq.s32.totalorder %s48, 3
      %p334 = por %p332, %p333
      %p336 = scmp.ne.s32.totalorder %s319, %s335
      %p337 = scmp.eq.s32.totalorder %s48, 0
      %p338 = por %p336, %p337
      %s339 = ssub.s32 %s49, %s61
      %p340 = scmp.eq.s32.totalorder %s339, 0
      %s342 = sadd.s32 %s341, 1
      %s343 = scalar_select %p340, %s341, %s342
      %p346 = pneg %p340
      %p347 = scmp.eq.s32.totalorder %s42, 3
      %p348 = por %p346, %p347
      %p349 = scmp.ne.s32.totalorder %s341, %s344
      %p350 = scmp.eq.s32.totalorder %s42, 0
      %p351 = por %p349, %p350
      %p352 = scmp.ne.s32.totalorder %s341, %s344
      %p353 = scmp.eq.s32.totalorder %s47, 3
      %p354 = por %p352, %p353
      %p355 = scmp.ne.s32.totalorder %s344, %s345
      %p356 = scmp.eq.s32.totalorder %s47, 0
      %p357 = por %p355, %p356
      %p358 = scmp.ne.s32.totalorder %s344, %s345
      %p359 = scmp.eq.s32.totalorder %s48, 3
      %p360 = por %p358, %p359
      %p362 = scmp.ne.s32.totalorder %s345, %s361
      %p363 = scmp.eq.s32.totalorder %s48, 0
      %p364 = por %p362, %p363
      %s365 = ssub.s32 %s49, %s61
      %p366 = scmp.eq.s32.totalorder %s365, 0
      %s368 = sadd.s32 %s367, 1
      %s369 = scalar_select %p366, %s367, %s368
      %p372 = pneg %p366
      %p373 = scmp.eq.s32.totalorder %s42, 3
      %p374 = por %p372, %p373
      %p375 = scmp.ne.s32.totalorder %s367, %s370
      %p376 = scmp.eq.s32.totalorder %s42, 0
      %p377 = por %p375, %p376
      %p378 = scmp.ne.s32.totalorder %s367, %s370
      %p379 = scmp.eq.s32.totalorder %s47, 3
      %p380 = por %p378, %p379
      %p381 = scmp.ne.s32.totalorder %s370, %s371
      %p382 = scmp.eq.s32.totalorder %s47, 0
      %p383 = por %p381, %p382
      %p384 = scmp.ne.s32.totalorder %s370, %s371
      %p385 = scmp.eq.s32.totalorder %s48, 3
      %p386 = por %p384, %p385
      %p388 = scmp.ne.s32.totalorder %s371, %s387
      %p389 = scmp.eq.s32.totalorder %s48, 0
      %p390 = por %p388, %p389
      %s391 = ssub.s32 %s49, %s61
      %p392 = scmp.eq.s32.totalorder %s391, 0
      %s394 = sadd.s32 %s393, 1
      %s395 = scalar_select %p392, %s393, %s394
      %p398 = pneg %p392
      %p399 = scmp.eq.s32.totalorder %s42, 3
      %p400 = por %p398, %p399
      %p401 = scmp.ne.s32.totalorder %s393, %s396
      %p402 = scmp.eq.s32.totalorder %s42, 0
      %p403 = por %p401, %p402
      %p404 = scmp.ne.s32.totalorder %s393, %s396
      %p405 = scmp.eq.s32.totalorder %s47, 3
      %p406 = por %p404, %p405
      %p407 = scmp.ne.s32.totalorder %s396, %s397
      %p408 = scmp.eq.s32.totalorder %s47, 0
      %p409 = por %p407, %p408
      %p410 = scmp.ne.s32.totalorder %s396, %s397
      %p411 = scmp.eq.s32.totalorder %s48, 3
      %p412 = por %p410, %p411
      %p414 = scmp.ne.s32.totalorder %s397, %s413
      %p415 = scmp.eq.s32.totalorder %s48, 0
      %p416 = por %p414, %p415
      %s417 = ssub.s32 %s49, %s61
      %p418 = scmp.eq.s32.totalorder %s417, 0
      %s420 = sadd.s32 %s419, 1
      %s421 = scalar_select %p418, %s419, %s420
      %p424 = pneg %p418
      %p425 = scmp.eq.s32.totalorder %s42, 3
      %p426 = por %p424, %p425
      %p427 = scmp.ne.s32.totalorder %s419, %s422
      %p428 = scmp.eq.s32.totalorder %s42, 0
      %p429 = por %p427, %p428
      %p430 = scmp.ne.s32.totalorder %s419, %s422
      %p431 = scmp.eq.s32.totalorder %s47, 3
      %p432 = por %p430, %p431
      %p433 = scmp.ne.s32.totalorder %s422, %s423
      %p434 = scmp.eq.s32.totalorder %s47, 0
      %p435 = por %p433, %p434
      %p436 = scmp.ne.s32.totalorder %s422, %s423
      %p437 = scmp.eq.s32.totalorder %s48, 3
      %p438 = por %p436, %p437
      %p440 = scmp.ne.s32.totalorder %s423, %s439
      %p441 = scmp.eq.s32.totalorder %s48, 0
      %p442 = por %p440, %p441
      %s444 = sadd.s32 %s443, 1
      %p447 = scmp.eq.s32.totalorder %s42, 3
      %p448 = scmp.ne.s32.totalorder %s443, %s445
      %p449 = scmp.eq.s32.totalorder %s42, 0
      %p450 = por %p448, %p449
      %p451 = scmp.ne.s32.totalorder %s443, %s445
      %p452 = scmp.eq.s32.totalorder %s47, 3
      %p453 = por %p451, %p452
      %p454 = scmp.ne.s32.totalorder %s445, %s446
      %p455 = scmp.eq.s32.totalorder %s47, 0
      %p456 = por %p454, %p455
      %p457 = scmp.ne.s32.totalorder %s445, %s446
      %p458 = scmp.eq.s32.totalorder %s48, 3
      %p459 = por %p457, %p458
      %p461 = scmp.ne.s32.totalorder %s446, %s460
      %p462 = scmp.eq.s32.totalorder %s48, 0
      %p463 = por %p461, %p462
      %s465 = sadd.s32 %s464, 1
      %p468 = scmp.eq.s32.totalorder %s42, 3
      %p469 = scmp.ne.s32.totalorder %s464, %s466
      %p470 = scmp.eq.s32.totalorder %s42, 0
      %p471 = por %p469, %p470
      %p472 = scmp.ne.s32.totalorder %s464, %s466
      %p473 = scmp.eq.s32.totalorder %s47, 3
      %p474 = por %p472, %p473
      %p475 = scmp.ne.s32.totalorder %s466, %s467
      %p476 = scmp.eq.s32.totalorder %s47, 0
      %p477 = por %p475, %p476
      %p478 = scmp.ne.s32.totalorder %s466, %s467
      %p479 = scmp.eq.s32.totalorder %s48, 3
      %p480 = por %p478, %p479
      %p482 = scmp.ne.s32.totalorder %s467, %s481
      %p483 = scmp.eq.s32.totalorder %s48, 0
      %p484 = por %p482, %p483
      %s486 = sadd.s32 %s485, 1
      %p489 = scmp.eq.s32.totalorder %s42, 3
      %p490 = scmp.ne.s32.totalorder %s485, %s487
      %p491 = scmp.eq.s32.totalorder %s42, 0
      %p492 = por %p490, %p491
      %p493 = scmp.ne.s32.totalorder %s485, %s487
      %p494 = scmp.eq.s32.totalorder %s47, 3
      %p495 = por %p493, %p494
      %p496 = scmp.ne.s32.totalorder %s487, %s488
      %p497 = scmp.eq.s32.totalorder %s47, 0
      %p498 = por %p496, %p497
      %p499 = scmp.ne.s32.totalorder %s487, %s488
      %p500 = scmp.eq.s32.totalorder %s48, 3
      %p501 = por %p499, %p500
      %p503 = scmp.ne.s32.totalorder %s488, %s502
      %p504 = scmp.eq.s32.totalorder %s48, 0
      %p505 = por %p503, %p504
      %s507 = sadd.s32 %s506, 1
      %p510 = scmp.eq.s32.totalorder %s42, 3
      %p511 = scmp.ne.s32.totalorder %s506, %s508
      %p512 = scmp.eq.s32.totalorder %s42, 0
      %p513 = por %p511, %p512
      %p514 = scmp.ne.s32.totalorder %s506, %s508
      %p515 = scmp.eq.s32.totalorder %s47, 3
      %p516 = por %p514, %p515
      %p517 = scmp.ne.s32.totalorder %s508, %s509
      %p518 = scmp.eq.s32.totalorder %s47, 0
      %p519 = por %p517, %p518
      %p520 = scmp.ne.s32.totalorder %s508, %s509
      %p521 = scmp.eq.s32.totalorder %s48, 3
      %p522 = por %p520, %p521
      %p524 = scmp.ne.s32.totalorder %s509, %s523
      %p525 = scmp.eq.s32.totalorder %s48, 0
      %p526 = por %p524, %p525
      %s528 = sadd.s32 %s527, 1
      %p531 = scmp.eq.s32.totalorder %s42, 3
      %p532 = scmp.ne.s32.totalorder %s527, %s529
      %p533 = scmp.eq.s32.totalorder %s42, 0
      %p534 = por %p532, %p533
      %p535 = scmp.ne.s32.totalorder %s527, %s529
      %p536 = scmp.eq.s32.totalorder %s47, 3
      %p537 = por %p535, %p536
      %p538 = scmp.ne.s32.totalorder %s529, %s530
      %p539 = scmp.eq.s32.totalorder %s47, 0
      %p540 = por %p538, %p539
      %p541 = scmp.ne.s32.totalorder %s529, %s530
      %p542 = scmp.eq.s32.totalorder %s48, 3
      %p543 = por %p541, %p542
      %p545 = scmp.ne.s32.totalorder %s530, %s544
      %p546 = scmp.eq.s32.totalorder %s48, 0
      %p547 = por %p545, %p546
      %p548 = scmp.le.s32.totalorder 1, %s42
      %p549 = scmp.lt.s32.totalorder %s42, 5
      %p550 = pnand %p548, %p549
      %p551 = pneg %p550
      // Predicated region
      $region9: #{transformer_vae_encoder.1} parent=5 // pred_check
        _
      $region10: #{transformer_vae_encoder.1} parent=5 // pred_check_branch
        %553 = sbr.rel (%p550) target = $region12
      $region11: #{transformer_vae_encoder.1} parent=5 // pred_region
        %s554 = ssub.s32 %s42, 1
        // Predicated region
        $region13: #{transformer_vae_encoder.1} parent=11 // pred_check
          %p555 = pneg %p75
        $region14: #{transformer_vae_encoder.1} parent=11 // pred_check_branch
          %557 = sbr.rel (%p555) target = $region16
        $region15: #{transformer_vae_encoder.1} parent=11 // pred_region
          _
        $region16: #{transformer_vae_encoder.1} parent=11 // pred_fallthru
          _
        // Predicated region
        $region17: #{transformer_vae_encoder.1} parent=11 // pred_check
          %p558 = pneg %p96
        $region18: #{transformer_vae_encoder.1} parent=11 // pred_check_branch
          %560 = sbr.rel (%p558) target = $region20
        $region19: #{transformer_vae_encoder.1} parent=11 // pred_region
          _
        $region20: #{transformer_vae_encoder.1} parent=11 // pred_fallthru
          _
        // Predicated region
        $region21: #{transformer_vae_encoder.1} parent=11 // pred_check
          %p561 = pneg %p117
        $region22: #{transformer_vae_encoder.1} parent=11 // pred_check_branch
          %563 = sbr.rel (%p561) target = $region24
        $region23: #{transformer_vae_encoder.1} parent=11 // pred_region
          %s565 = ssub.s32 64, 64
          %566 = vsyncadd [#allocation5], %s565
          %s568 = sshll.u32 [#allocation4], 4
          %s569 = int_to_ptr.vmem [resolvable:$true] %s568
          %571 = dma.hbm_to_vmem [thread:$0]  %s2, 64, %s569, [#allocation5]
        $region24: #{transformer_vae_encoder.1} parent=11 // pred_fallthru
          _
        // Predicated region
        $region25: #{transformer_vae_encoder.1} parent=11 // pred_check
          %p572 = pneg %p456
        $region26: #{transformer_vae_encoder.1} parent=11 // pred_check_branch
          %574 = sbr.rel (%p572) target = $region28
        $region27: #{transformer_vae_encoder.1} parent=11 // pred_region
          %s576 = ssub.s32 1024, 1024
          %577 = vsyncadd [#allocation19], %s576
          %s578 = sshll.u32 [#allocation20], 4
          %s579 = int_to_ptr.vmem [resolvable:$true] %s578
          %584 = dma.hbm_to_vmem [thread:$0]  %s15, 1024, %s579, [#allocation19], 128, 128, 8
        $region28: #{transformer_vae_encoder.1} parent=11 // pred_fallthru
          _
        // Predicated region
        $region29: #{transformer_vae_encoder.1} parent=11 // pred_check
          %p585 = pneg %p477
        $region30: #{transformer_vae_encoder.1} parent=11 // pred_check_branch
          %587 = sbr.rel (%p585) target = $region32
        $region31: #{transformer_vae_encoder.1} parent=11 // pred_region
          _
        $region32: #{transformer_vae_encoder.1} parent=11 // pred_fallthru
          _
        // Predicated region
        $region33: #{transformer_vae_encoder.1} parent=11 // pred_check
          %p588 = pneg %p498
        $region34: #{transformer_vae_encoder.1} parent=11 // pred_check_branch
          %590 = sbr.rel (%p588) target = $region36
        $region35: #{transformer_vae_encoder.1} parent=11 // pred_region
          %s592 = ssub.s32 512, 512
          %593 = vsyncadd [#allocation22], %s592
          %s594 = sshll.u32 [#allocation21], 4
          %s595 = int_to_ptr.vmem [resolvable:$true] %s594
          %600 = dma.hbm_to_vmem [thread:$0]  %s17, 512, %s595, [#allocation22], 128, 128, 8
        $region36: #{transformer_vae_encoder.1} parent=11 // pred_fallthru
          _
        // Predicated region
        $region37: #{transformer_vae_encoder.1} parent=11 // pred_check
          %p601 = pneg %p519
        $region38: #{transformer_vae_encoder.1} parent=11 // pred_check_branch
          %603 = sbr.rel (%p601) target = $region40
        $region39: #{transformer_vae_encoder.1} parent=11 // pred_region
          %s605 = ssub.s32 16, 16
          %606 = vsyncadd [#allocation22], %s605
          %s608 = sshll.u32 [#allocation23], 4
          %s609 = int_to_ptr.vmem [resolvable:$true] %s608
          %611 = dma.hbm_to_vmem [thread:$0]  %s18, 16, %s609, [#allocation22]
        $region40: #{transformer_vae_encoder.1} parent=11 // pred_fallthru
          _
      $region12: #{transformer_vae_encoder.1} parent=5 // pred_fallthru
        _
      %p612 = scmp.lt.s32.totalorder %s42, 4
      // Predicated region
      $region41: #{transformer_vae_encoder.1} parent=5 // pred_check
        %p613 = pneg %p612
      $region42: #{transformer_vae_encoder.1} parent=5 // pred_check_branch
        %615 = sbr.rel (%p613) target = $region44
      $region43: #{transformer_vae_encoder.1} parent=5 // pred_region
        // Predicated region
        $region45: #{transformer_vae_encoder.1} parent=43 // pred_check
          %p616 = pneg %p137
        $region46: #{transformer_vae_encoder.1} parent=43 // pred_check_branch
          %618 = sbr.rel (%p616) target = $region48
        $region47: #{transformer_vae_encoder.1} parent=43 // pred_region
          %p619 = scmp.lt.s32.totalorder %s49, 1
          %s620 = scalar_select %p619, %s49, 1
          %s621 = smul.addr %s620, 4
          %s622 = smul.addr %s621, 4
          %s623 = scalar_lea.vmem %s3, %s622
        $region48: #{transformer_vae_encoder.1} parent=43 // pred_fallthru
          _
        // Predicated region
        $region49: #{transformer_vae_encoder.1} parent=43 // pred_check
          %p624 = pneg %p163
        $region50: #{transformer_vae_encoder.1} parent=43 // pred_check_branch
          %626 = sbr.rel (%p624) target = $region52
        $region51: #{transformer_vae_encoder.1} parent=43 // pred_region
          %s627 = sand.u32 %s42, 1
          %s628 = scalar_lea.sflag [#allocation7], %s627
          %s629 = sand.u32 %s153, 1
          %s630 = scalar_lea.vmem [#allocation6], %s629
          %s632 = ssub.s32 16, 16
          %633 = vsyncadd %s628, %s632
          %s634 = smul.addr %s49, 16
          %s635 = scalar_lea.hbm %s4, %s634
          %s637 = sshll.u32 %s630, 4
          %s638 = int_to_ptr.vmem [resolvable:$true] %s637
          %640 = dma.hbm_to_vmem [thread:$0]  %s635, 16, %s638, %s628
        $region52: #{transformer_vae_encoder.1} parent=43 // pred_fallthru
          _
        // Predicated region
        $region53: #{transformer_vae_encoder.1} parent=43 // pred_check
          %p641 = pneg %p189
        $region54: #{transformer_vae_encoder.1} parent=43 // pred_check_branch
          %643 = sbr.rel (%p641) target = $region56
        $region55: #{transformer_vae_encoder.1} parent=43 // pred_region
          %p644 = scmp.lt.s32.totalorder %s49, 1
          %s645 = scalar_select %p644, %s49, 1
          %s646 = smul.addr %s645, 4
          %s647 = smul.addr %s646, 4
          %s648 = scalar_lea.vmem %s5, %s647
        $region56: #{transformer_vae_encoder.1} parent=43 // pred_fallthru
          _
        // Predicated region
        $region57: #{transformer_vae_encoder.1} parent=43 // pred_check
          %p649 = pneg %p215
        $region58: #{transformer_vae_encoder.1} parent=43 // pred_check_branch
          %651 = sbr.rel (%p649) target = $region60
        $region59: #{transformer_vae_encoder.1} parent=43 // pred_region
          %p652 = scmp.lt.s32.totalorder %s49, 1
          %s653 = scalar_select %p652, %s49, 1
          %s654 = scalar_lea.vmem %s6, %s653
        $region60: #{transformer_vae_encoder.1} parent=43 // pred_fallthru
          _
        // Predicated region
        $region61: #{transformer_vae_encoder.1} parent=43 // pred_check
          %p655 = pneg %p243
        $region62: #{transformer_vae_encoder.1} parent=43 // pred_check_branch
          %657 = sbr.rel (%p655) target = $region64
        $region63: #{transformer_vae_encoder.1} parent=43 // pred_region
          %s658 = sand.u32 %s42, 1
          %s659 = scalar_lea.sflag [#allocation7], %s658
          %s660 = sand.u32 %s233, 1
          %s661 = smul.addr %s660, 128
          %s662 = scalar_lea.vmem [#allocation8], %s661
          %s663 = smul.u32 8, %s50
          %s665 = ssub.s32 2048, 2048
          %666 = vsyncadd %s659, %s665
          %s667 = smul.addr %s49, 64
          %s668 = sadd.s32 %s663, %s667
          %s669 = smul.addr %s668, 64
          %s670 = scalar_lea.hbm %s7, %s669
          %s671 = sshll.u32 %s662, 4
          %s672 = int_to_ptr.vmem [resolvable:$true] %s671
          %677 = dma.hbm_to_vmem [thread:$0]  %s670, 2048, %s672, %s659, 1024, 512, 32
        $region64: #{transformer_vae_encoder.1} parent=43 // pred_fallthru
          _
        // Predicated region
        $region65: #{transformer_vae_encoder.1} parent=43 // pred_check
          %p678 = pneg %p271
        $region66: #{transformer_vae_encoder.1} parent=43 // pred_check_branch
          %680 = sbr.rel (%p678) target = $region68
        $region67: #{transformer_vae_encoder.1} parent=43 // pred_region
          %s681 = sand.u32 %s42, 1
          %s682 = scalar_lea.sflag [#allocation10], %s681
          %s683 = sand.u32 %s261, 1
          %s684 = smul.addr %s683, 8
          %s685 = scalar_lea.vmem [#allocation9], %s684
          %s686 = smul.u32 8, %s50
          %s688 = ssub.s32 128, 128
          %689 = vsyncadd %s682, %s688
          %s690 = smul.addr %s49, 16
          %s691 = sadd.s32 %s686, %s690
          %s692 = smul.addr %s691, 16
          %s693 = scalar_lea.hbm %s8, %s692
          %s695 = sshll.u32 %s685, 4
          %s696 = int_to_ptr.vmem [resolvable:$true] %s695
          %698 = dma.hbm_to_vmem [thread:$0]  %s693, 128, %s696, %s682
        $region68: #{transformer_vae_encoder.1} parent=43 // pred_fallthru
          _
        // Predicated region
        $region69: #{transformer_vae_encoder.1} parent=43 // pred_check
          %p699 = pneg %p299
        $region70: #{transformer_vae_encoder.1} parent=43 // pred_check_branch
          %701 = sbr.rel (%p699) target = $region72
        $region71: #{transformer_vae_encoder.1} parent=43 // pred_region
          %s702 = sand.u32 %s42, 1
          %s703 = scalar_lea.sflag [#allocation10], %s702
          %s704 = sand.u32 %s289, 1
          %s705 = smul.addr %s704, 128
          %s706 = scalar_lea.vmem [#allocation11], %s705
          %s707 = smul.u32 8, %s50
          %s709 = ssub.s32 2048, 2048
          %710 = vsyncadd %s703, %s709
          %s711 = smul.addr %s49, 64
          %s712 = sadd.s32 %s707, %s711
          %s713 = smul.addr %s712, 64
          %s714 = scalar_lea.hbm %s9, %s713
          %s715 = sshll.u32 %s706, 4
          %s716 = int_to_ptr.vmem [resolvable:$true] %s715
          %721 = dma.hbm_to_vmem [thread:$0]  %s714, 2048, %s716, %s703, 1024, 512, 32
        $region72: #{transformer_vae_encoder.1} parent=43 // pred_fallthru
          _
        // Predicated region
        $region73: #{transformer_vae_encoder.1} parent=43 // pred_check
          %p722 = pneg %p325
        $region74: #{transformer_vae_encoder.1} parent=43 // pred_check_branch
          %724 = sbr.rel (%p722) target = $region76
        $region75: #{transformer_vae_encoder.1} parent=43 // pred_region
          %s725 = sand.u32 %s42, 1
          %s726 = scalar_lea.sflag [#allocation13], %s725
          %s727 = sand.u32 %s315, 1
          %s728 = scalar_lea.vmem [#allocation12], %s727
          %s730 = ssub.s32 16, 16
          %731 = vsyncadd %s726, %s730
          %s732 = smul.addr %s49, 16
          %s733 = scalar_lea.hbm %s10, %s732
          %s735 = sshll.u32 %s728, 4
          %s736 = int_to_ptr.vmem [resolvable:$true] %s735
          %738 = dma.hbm_to_vmem [thread:$0]  %s733, 16, %s736, %s726
        $region76: #{transformer_vae_encoder.1} parent=43 // pred_fallthru
          _
        // Predicated region
        $region77: #{transformer_vae_encoder.1} parent=43 // pred_check
          %p739 = pneg %p351
        $region78: #{transformer_vae_encoder.1} parent=43 // pred_check_branch
          %741 = sbr.rel (%p739) target = $region80
        $region79: #{transformer_vae_encoder.1} parent=43 // pred_region
          %s742 = sand.u32 %s42, 1
          %s743 = scalar_lea.sflag [#allocation13], %s742
          %s744 = sand.u32 %s341, 1
          %s745 = scalar_lea.vmem [#allocation14], %s744
          %s747 = ssub.s32 16, 16
          %748 = vsyncadd %s743, %s747
          %s749 = smul.addr %s49, 16
          %s750 = scalar_lea.hbm %s11, %s749
          %s752 = sshll.u32 %s745, 4
          %s753 = int_to_ptr.vmem [resolvable:$true] %s752
          %755 = dma.hbm_to_vmem [thread:$0]  %s750, 16, %s753, %s743
        $region80: #{transformer_vae_encoder.1} parent=43 // pred_fallthru
          _
        // Predicated region
        $region81: #{transformer_vae_encoder.1} parent=43 // pred_check
          %p756 = pneg %p377
        $region82: #{transformer_vae_encoder.1} parent=43 // pred_check_branch
          %758 = sbr.rel (%p756) target = $region84
        $region83: #{transformer_vae_encoder.1} parent=43 // pred_region
          %s759 = sand.u32 %s42, 1
          %s760 = scalar_lea.sflag [#allocation16], %s759
          %s761 = sand.u32 %s367, 1
          %s762 = scalar_lea.vmem [#allocation15], %s761
          %s764 = ssub.s32 16, 16
          %765 = vsyncadd %s760, %s764
          %s766 = smul.addr %s49, 16
          %s767 = scalar_lea.hbm %s12, %s766
          %s769 = sshll.u32 %s762, 4
          %s770 = int_to_ptr.vmem [resolvable:$true] %s769
          %772 = dma.hbm_to_vmem [thread:$0]  %s767, 16, %s770, %s760
        $region84: #{transformer_vae_encoder.1} parent=43 // pred_fallthru
          _
        // Predicated region
        $region85: #{transformer_vae_encoder.1} parent=43 // pred_check
          %p773 = pneg %p403
        $region86: #{transformer_vae_encoder.1} parent=43 // pred_check_branch
          %775 = sbr.rel (%p773) target = $region88
        $region87: #{transformer_vae_encoder.1} parent=43 // pred_region
          %s776 = sand.u32 %s42, 1
          %s777 = scalar_lea.sflag [#allocation16], %s776
          %s778 = sand.u32 %s393, 1
          %s779 = scalar_lea.vmem [#allocation17], %s778
          %s781 = ssub.s32 16, 16
          %782 = vsyncadd %s777, %s781
          %s783 = smul.addr %s49, 16
          %s784 = scalar_lea.hbm %s13, %s783
          %s786 = sshll.u32 %s779, 4
          %s787 = int_to_ptr.vmem [resolvable:$true] %s786
          %789 = dma.hbm_to_vmem [thread:$0]  %s784, 16, %s787, %s777
        $region88: #{transformer_vae_encoder.1} parent=43 // pred_fallthru
          _
        // Predicated region
        $region89: #{transformer_vae_encoder.1} parent=43 // pred_check
          %p790 = pneg %p429
        $region90: #{transformer_vae_encoder.1} parent=43 // pred_check_branch
          %792 = sbr.rel (%p790) target = $region92
        $region91: #{transformer_vae_encoder.1} parent=43 // pred_region
          %s793 = sand.u32 %s42, 1
          %s794 = scalar_lea.sflag [#allocation19], %s793
          %s795 = sand.u32 %s419, 1
          %s796 = scalar_lea.vmem [#allocation18], %s795
          %s798 = ssub.s32 16, 16
          %799 = vsyncadd %s794, %s798
          %s800 = smul.addr %s49, 16
          %s801 = scalar_lea.hbm %s14, %s800
          %s803 = sshll.u32 %s796, 4
          %s804 = int_to_ptr.vmem [resolvable:$true] %s803
          %806 = dma.hbm_to_vmem [thread:$0]  %s801, 16, %s804, %s794
        $region92: #{transformer_vae_encoder.1} parent=43 // pred_fallthru
          _
      $region44: #{transformer_vae_encoder.1} parent=5 // pred_fallthru
        _
      %p807 = scmp.le.s32.totalorder 1, %s42
      %p808 = scmp.lt.s32.totalorder %s42, 5
      %p809 = pnand %p807, %p808
      %p810 = pneg %p809
      // Predicated region
      $region93: #{transformer_vae_encoder.1} parent=5 // pred_check
        _
      $region94: #{transformer_vae_encoder.1} parent=5 // pred_check_branch
        %812 = sbr.rel (%p809) target = $region96
      $region95: #{transformer_vae_encoder.1} parent=5 // pred_region
        %s813 = ssub.s32 %s42, 1
        // Predicated region
        $region97: #{transformer_vae_encoder.1} parent=95 // pred_check
          %p814 = pneg %p117
        $region98: #{transformer_vae_encoder.1} parent=95 // pred_check_branch
          %816 = sbr.rel (%p814) target = $region100
        $region99: #{transformer_vae_encoder.1} parent=95 // pred_region
          %817 = dma.done [#allocation5], 64
        $region100: #{transformer_vae_encoder.1} parent=95 // pred_fallthru
          _
        %s818 = sand.u32 %s47, 1
        %s819 = scalar_lea.sflag [#allocation7], %s818
        %s820 = sand.u32 %s156, 1
        %s821 = scalar_lea.vmem [#allocation6], %s820
        // Predicated region
        $region101: #{transformer_vae_encoder.1} parent=95 // pred_check
          %p822 = pneg %p169
        $region102: #{transformer_vae_encoder.1} parent=95 // pred_check_branch
          %824 = sbr.rel (%p822) target = $region104
        $region103: #{transformer_vae_encoder.1} parent=95 // pred_region
          %825 = dma.done %s819, 16
        $region104: #{transformer_vae_encoder.1} parent=95 // pred_fallthru
          _
        %s826 = sand.u32 %s47, 1
        %s827 = scalar_lea.sflag [#allocation7], %s826
        %s828 = sand.u32 %s236, 1
        %s829 = smul.addr %s828, 128
        %s830 = scalar_lea.vmem [#allocation8], %s829
        // Predicated region
        $region105: #{transformer_vae_encoder.1} parent=95 // pred_check
          %p831 = pneg %p249
        $region106: #{transformer_vae_encoder.1} parent=95 // pred_check_branch
          %833 = sbr.rel (%p831) target = $region108
        $region107: #{transformer_vae_encoder.1} parent=95 // pred_region
          %834 = dma.done %s827, 2048
        $region108: #{transformer_vae_encoder.1} parent=95 // pred_fallthru
          _
        %s835 = sand.u32 %s47, 1
        %s836 = scalar_lea.sflag [#allocation10], %s835
        %s837 = sand.u32 %s264, 1
        %s838 = smul.addr %s837, 8
        %s839 = scalar_lea.vmem [#allocation9], %s838
        // Predicated region
        $region109: #{transformer_vae_encoder.1} parent=95 // pred_check
          %p840 = pneg %p277
        $region110: #{transformer_vae_encoder.1} parent=95 // pred_check_branch
          %842 = sbr.rel (%p840) target = $region112
        $region111: #{transformer_vae_encoder.1} parent=95 // pred_region
          %843 = dma.done %s836, 128
        $region112: #{transformer_vae_encoder.1} parent=95 // pred_fallthru
          _
        %s844 = sand.u32 %s47, 1
        %s845 = scalar_lea.sflag [#allocation10], %s844
        %s846 = sand.u32 %s292, 1
        %s847 = smul.addr %s846, 128
        %s848 = scalar_lea.vmem [#allocation11], %s847
        // Predicated region
        $region113: #{transformer_vae_encoder.1} parent=95 // pred_check
          %p849 = pneg %p305
        $region114: #{transformer_vae_encoder.1} parent=95 // pred_check_branch
          %851 = sbr.rel (%p849) target = $region116
        $region115: #{transformer_vae_encoder.1} parent=95 // pred_region
          %852 = dma.done %s845, 2048
        $region116: #{transformer_vae_encoder.1} parent=95 // pred_fallthru
          _
        %s853 = sand.u32 %s47, 1
        %s854 = scalar_lea.sflag [#allocation13], %s853
        %s855 = sand.u32 %s318, 1
        %s856 = scalar_lea.vmem [#allocation12], %s855
        // Predicated region
        $region117: #{transformer_vae_encoder.1} parent=95 // pred_check
          %p857 = pneg %p331
        $region118: #{transformer_vae_encoder.1} parent=95 // pred_check_branch
          %859 = sbr.rel (%p857) target = $region120
        $region119: #{transformer_vae_encoder.1} parent=95 // pred_region
          %860 = dma.done %s854, 16
        $region120: #{transformer_vae_encoder.1} parent=95 // pred_fallthru
          _
        %s861 = sand.u32 %s47, 1
        %s862 = scalar_lea.sflag [#allocation13], %s861
        %s863 = sand.u32 %s344, 1
        %s864 = scalar_lea.vmem [#allocation14], %s863
        // Predicated region
        $region121: #{transformer_vae_encoder.1} parent=95 // pred_check
          %p865 = pneg %p357
        $region122: #{transformer_vae_encoder.1} parent=95 // pred_check_branch
          %867 = sbr.rel (%p865) target = $region124
        $region123: #{transformer_vae_encoder.1} parent=95 // pred_region
          %868 = dma.done %s862, 16
        $region124: #{transformer_vae_encoder.1} parent=95 // pred_fallthru
          _
        %s869 = sand.u32 %s47, 1
        %s870 = scalar_lea.sflag [#allocation16], %s869
        %s871 = sand.u32 %s370, 1
        %s872 = scalar_lea.vmem [#allocation15], %s871
        // Predicated region
        $region125: #{transformer_vae_encoder.1} parent=95 // pred_check
          %p873 = pneg %p383
        $region126: #{transformer_vae_encoder.1} parent=95 // pred_check_branch
          %875 = sbr.rel (%p873) target = $region128
        $region127: #{transformer_vae_encoder.1} parent=95 // pred_region
          %876 = dma.done %s870, 16
        $region128: #{transformer_vae_encoder.1} parent=95 // pred_fallthru
          _
        %s877 = sand.u32 %s47, 1
        %s878 = scalar_lea.sflag [#allocation16], %s877
        %s879 = sand.u32 %s396, 1
        %s880 = scalar_lea.vmem [#allocation17], %s879
        // Predicated region
        $region129: #{transformer_vae_encoder.1} parent=95 // pred_check
          %p881 = pneg %p409
        $region130: #{transformer_vae_encoder.1} parent=95 // pred_check_branch
          %883 = sbr.rel (%p881) target = $region132
        $region131: #{transformer_vae_encoder.1} parent=95 // pred_region
          %884 = dma.done %s878, 16
        $region132: #{transformer_vae_encoder.1} parent=95 // pred_fallthru
          _
        %s885 = sand.u32 %s47, 1
        %s886 = scalar_lea.sflag [#allocation19], %s885
        %s887 = sand.u32 %s422, 1
        %s888 = scalar_lea.vmem [#allocation18], %s887
        // Predicated region
        $region133: #{transformer_vae_encoder.1} parent=95 // pred_check
          %p889 = pneg %p435
        $region134: #{transformer_vae_encoder.1} parent=95 // pred_check_branch
          %891 = sbr.rel (%p889) target = $region136
        $region135: #{transformer_vae_encoder.1} parent=95 // pred_region
          %892 = dma.done %s886, 16
        $region136: #{transformer_vae_encoder.1} parent=95 // pred_fallthru
          _
        // Predicated region
        $region137: #{transformer_vae_encoder.1} parent=95 // pred_check
          %p893 = pneg %p456
        $region138: #{transformer_vae_encoder.1} parent=95 // pred_check_branch
          %895 = sbr.rel (%p893) target = $region140
        $region139: #{transformer_vae_encoder.1} parent=95 // pred_region
          %896 = dma.done [#allocation19], 1024
        $region140: #{transformer_vae_encoder.1} parent=95 // pred_fallthru
          _
        // Predicated region
        $region141: #{transformer_vae_encoder.1} parent=95 // pred_check
          %p897 = pneg %p498
        $region142: #{transformer_vae_encoder.1} parent=95 // pred_check_branch
          %899 = sbr.rel (%p897) target = $region144
        $region143: #{transformer_vae_encoder.1} parent=95 // pred_region
          %900 = dma.done [#allocation22], 512
        $region144: #{transformer_vae_encoder.1} parent=95 // pred_fallthru
          _
        // Predicated region
        $region145: #{transformer_vae_encoder.1} parent=95 // pred_check
          %p901 = pneg %p519
        $region146: #{transformer_vae_encoder.1} parent=95 // pred_check_branch
          %903 = sbr.rel (%p901) target = $region148
        $region147: #{transformer_vae_encoder.1} parent=95 // pred_region
          %904 = dma.done [#allocation22], 16
        $region148: #{transformer_vae_encoder.1} parent=95 // pred_fallthru
          _
        %p905 = pneg %p75
        %p906 = pneg %p72
        %p907 = pneg %p96
        %p908 = pneg %p93
        %p909 = pneg %p117
        %p910 = pneg %p114
        %p911 = scmp.lt.s32.totalorder %s51, 1
        %s912 = scalar_select %p911, %s51, 1
        %s913 = smul.addr %s912, 4
        %s914 = smul.addr %s913, 4
        %s915 = scalar_lea.vmem %s3, %s914
        %p916 = pneg %p143
        %p917 = pneg %p140
        %s918 = sand.u32 %s47, 1
        %s919 = scalar_lea.sflag [#allocation7], %s918
        %s920 = sand.u32 %s156, 1
        %s921 = scalar_lea.vmem [#allocation6], %s920
        %p922 = pneg %p169
        %p923 = pneg %p166
        %p924 = scmp.lt.s32.totalorder %s51, 1
        %s925 = scalar_select %p924, %s51, 1
        %s926 = smul.addr %s925, 4
        %s927 = smul.addr %s926, 4
        %s928 = scalar_lea.vmem %s5, %s927
        %p929 = pneg %p195
        %p930 = pneg %p192
        %p931 = scmp.lt.s32.totalorder %s51, 1
        %s932 = scalar_select %p931, %s51, 1
        %s933 = scalar_lea.vmem %s6, %s932
        %p934 = pneg %p221
        %p935 = pneg %p218
        %s936 = sand.u32 %s47, 1
        %s937 = scalar_lea.sflag [#allocation7], %s936
        %s938 = sand.u32 %s236, 1
        %s939 = smul.addr %s938, 128
        %s940 = scalar_lea.vmem [#allocation8], %s939
        %p941 = pneg %p249
        %p942 = pneg %p246
        %s943 = sand.u32 %s47, 1
        %s944 = scalar_lea.sflag [#allocation10], %s943
        %s945 = sand.u32 %s264, 1
        %s946 = smul.addr %s945, 8
        %s947 = scalar_lea.vmem [#allocation9], %s946
        %p948 = pneg %p277
        %p949 = pneg %p274
        %s950 = sand.u32 %s47, 1
        %s951 = scalar_lea.sflag [#allocation10], %s950
        %s952 = sand.u32 %s292, 1
        %s953 = smul.addr %s952, 128
        %s954 = scalar_lea.vmem [#allocation11], %s953
        %p955 = pneg %p305
        %p956 = pneg %p302
        %s957 = sand.u32 %s47, 1
        %s958 = scalar_lea.sflag [#allocation13], %s957
        %s959 = sand.u32 %s318, 1
        %s960 = scalar_lea.vmem [#allocation12], %s959
        %p961 = pneg %p331
        %p962 = pneg %p328
        %s963 = sand.u32 %s47, 1
        %s964 = scalar_lea.sflag [#allocation13], %s963
        %s965 = sand.u32 %s344, 1
        %s966 = scalar_lea.vmem [#allocation14], %s965
        %p967 = pneg %p357
        %p968 = pneg %p354
        %s969 = sand.u32 %s47, 1
        %s970 = scalar_lea.sflag [#allocation16], %s969
        %s971 = sand.u32 %s370, 1
        %s972 = scalar_lea.vmem [#allocation15], %s971
        %p973 = pneg %p383
        %p974 = pneg %p380
        %s975 = sand.u32 %s47, 1
        %s976 = scalar_lea.sflag [#allocation16], %s975
        %s977 = sand.u32 %s396, 1
        %s978 = scalar_lea.vmem [#allocation17], %s977
        %p979 = pneg %p409
        %p980 = pneg %p406
        %s981 = sand.u32 %s47, 1
        %s982 = scalar_lea.sflag [#allocation19], %s981
        %s983 = sand.u32 %s422, 1
        %s984 = scalar_lea.vmem [#allocation18], %s983
        %p985 = pneg %p435
        %p986 = pneg %p432
        %p987 = pneg %p456
        %p988 = pneg %p453
        %p989 = pneg %p477
        %p990 = pneg %p474
        %p991 = pneg %p498
        %p992 = pneg %p495
        %p993 = pneg %p519
        %p994 = pneg %p516
        %p995 = pneg %p540
        %p996 = pneg %p537
        %p997 = scmp.lt.s32.totalorder %s51, 1
        %s998 = scalar_select %p997, %s51, 1
        %s999 = smul.addr %s998, 4
        %s1000 = smul.addr %s999, 4
        %s1001 = scalar_lea.vmem %s3, %s1000
        %p1002 = scmp.lt.s32.totalorder %s51, 1
        %s1003 = scalar_select %p1002, %s51, 1
        %s1004 = smul.addr %s1003, 4
        %s1005 = smul.addr %s1004, 4
        %s1006 = scalar_lea.vmem %s5, %s1005
        %p1007 = scmp.lt.s32.totalorder %s51, 1
        %s1008 = scalar_select %p1007, %s51, 1
        %s1009 = scalar_lea.vmem %s6, %s1008
        %s1010 = smul.u32 8, %s52
        %s1011 = smul.u32 8, %s52
        %s1012 = smul.u32 8, %s52
        %p1014 = scmp.eq.s32.totalorder %s52, 0
        // Predicated region
        $region149: #{transformer_vae_encoder.1} parent=95 // pred_check
          %p1015 = pneg %p1014
        $region150: #{transformer_vae_encoder.1} parent=95 // pred_check_branch
          %1017 = sbr.rel (%p1015) target = $region152
        $region151: #{transformer_vae_encoder.1} parent=95 // pred_region
          %p1018 = scmp.eq.s32.totalorder %s51, 0
          // Predicated region
          $region153: #{transformer_vae_encoder.1} parent=151 // pred_check
            %p1019 = pneg %p1018
          $region154: #{transformer_vae_encoder.1} parent=151 // pred_check_branch
            %1021 = sbr.rel (%p1019) target = $region156
          $region155: #{transformer_vae_encoder.1} parent=151 // pred_region
            %v1022 = vld [vmem:[%s0] sm:$0xff]
            %v1023 = vld [vmem:[%s0 + $0x8] sm:$0xff]
            %v1024 = vld [vmem:[#allocation4] sm:$0xf]
            %v1025 = vld [vmem:[%s1] sm:$0xff]
            %v1026 = vld [vmem:[%s1 + $0x8] sm:$0xff]
            %vm1027 = vcmask 31744
            %v1029 = vsel %vm1027, %v1022, 0
            %v1032 = vsel %vm1027, %v1023, 0
            %vm1034 = vcmask 1043456
            %v1036 = vsel %vm1034, %v1024, 0
            %1038 = vmatprep.subr.mxu0 0.0
            %1039 = vmatpush1.msra.mxu0 %v1036
            %1040 = vmatprep.subr.mxu0 0.0
            %1041 = vmatpush1.msra.mxu0 0.0
            %1042 = vmatprep.subr.mxu0 0.0
            %1043 = vmatpush1.msra.mxu0 0.0
            %1044 = vmatprep.subr.mxu0 0.0
            %1045 = vmatpush1.msra.mxu0 0.0
            %1046 = vmatprep.subr.mxu0 0.0
            %1047 = vmatpush1.msra.mxu0 0.0
            %1048 = vmatprep.subr.mxu0 0.0
            %1049 = vmatpush1.msra.mxu0 0.0
            %1050 = vmatprep.subr.mxu0 0.0
            %1051 = vmatpush1.msra.mxu0 0.0
            %1052 = vmatprep.subr.mxu0 0.0
            %1053 = vmatpush1.msra.mxu0 0.0
            %1054 = vmatprep.subr.mxu0 0.0
            %1055 = vmatpush1.msra.mxu0 0.0
            %1056 = vmatprep.subr.mxu0 0.0
            %1057 = vmatpush1.msra.mxu0 0.0
            %1058 = vmatprep.subr.mxu0 0.0
            %1059 = vmatpush1.msra.mxu0 0.0
            %1060 = vmatprep.subr.mxu0 0.0
            %1061 = vmatpush1.msra.mxu0 0.0
            %1062 = vmatprep.subr.mxu0 0.0
            %1063 = vmatpush1.msra.mxu0 0.0
            %1064 = vmatprep.subr.mxu0 0.0
            %1065 = vmatpush1.msra.mxu0 0.0
            %1066 = vmatprep.subr.mxu0 0.0
            %1067 = vmatpush1.msra.mxu0 0.0
            %1068 = vmatprep.subr.mxu0 0.0
            %1069 = vmatpush1.msra.mxu0 0.0
            %1070 = vmatprep.subr.mxu0 0.0
            %1071 = vmatpush1.msra.mxu0 0.0
            %1072 = vmatprep.subr.mxu0 0.0
            %1073 = vmatpush1.msra.mxu0 0.0
            %1074 = vmatprep.subr.mxu0 0.0
            %1075 = vmatpush1.msra.mxu0 0.0
            %1076 = vmatprep.subr.mxu0 0.0
            %1077 = vmatpush1.msra.mxu0 0.0
            %1078 = vmatprep.subr.mxu0 0.0
            %1079 = vmatpush1.msra.mxu0 0.0
            %1080 = vmatprep.subr.mxu0 0.0
            %1081 = vmatpush1.msra.mxu0 0.0
            %1082 = vmatprep.subr.mxu0 0.0
            %1083 = vmatpush1.msra.mxu0 0.0
            %1084 = vmatprep.subr.mxu0 0.0
            %1085 = vmatpush1.msra.mxu0 0.0
            %1086 = vmatprep.subr.mxu0 0.0
            %1087 = vmatpush1.msra.mxu0 0.0
            %1088 = vmatprep.subr.mxu0 0.0
            %1089 = vmatpush1.msra.mxu0 0.0
            %1090 = vmatprep.subr.mxu0 0.0
            %1091 = vmatpush1.msra.mxu0 0.0
            %1092 = vmatprep.subr.mxu0 0.0
            %1093 = vmatpush1.msra.mxu0 0.0
            %1094 = vmatprep.subr.mxu0 0.0
            %1095 = vmatpush1.msra.mxu0 0.0
            %1096 = vmatprep.subr.mxu0 0.0
            %1097 = vmatpush1.msra.mxu0 0.0
            %1098 = vmatprep.subr.mxu0 0.0
            %1099 = vmatpush1.msra.mxu0 0.0
            %1100 = vmatprep.subr.mxu0 0.0
            %1101 = vmatpush1.msra.mxu0 0.0
            %1102 = vmatprep.mubr.f32.mxu0 0.0
            %1103 = vmatmul.mubr.f32.gmra.mrb[0].mxu0 %v1029
            %v1104 = vpop.f32.mrb[0].mxu0
            %v1105 = vadd.f32 %v1025, %v1104
            %v1106 = vpop.f32.mrb[0].mxu0
            %1107 = vmatprep.mubr.f32.mxu0 0.0
            %1108 = vmatmul.mubr.f32.gmra.mrb[0].mxu0 %v1032
            %v1109 = vpop.f32.mrb[0].mxu0
            %v1110 = vadd.f32 %v1026, %v1109
            %v1111 = vpop.f32.mrb[0].mxu0
            %1112 = vdwg.mxu0
            %vm1113 = vcmask 261120
            %1114 = vst.msk [vmem:[#allocation2] sm:$0xff] %vm1113, %v1105
            %1115 = vst.msk [vmem:[#allocation2 + $0x8] sm:$0xff] %vm1113, %v1110
          $region156: #{transformer_vae_encoder.1} parent=151 // pred_fallthru
            _
          %v1116 = vld [vmem:[#allocation2] sm:$0xff]
          %v1117 = vld [vmem:[#allocation2 + $0x8] sm:$0xff]
          %v1118 = vpack.c.bf16 %v1117, %v1116
          %v1119 = vld [vmem:[%s1001] sm:$0xf]
          %v1120 = vld [vmem:[%s1001 + $0x4] sm:$0xf]
          %v1121 = vld [vmem:[%s1001 + $0x8] sm:$0xf]
          %v1122 = vld [vmem:[%s1001 + $0xc] sm:$0xf]
          %v1123 = vld [vmem:[%s821] sm:$0x1]
          %v1125 = vlaneseq
          %v1126 = vshrl.u32 %v1125, 7
          %v1127 = vsub.s32 0, %v1126
          %v1128 = vrot.slane %v1123, %v1127
          %v1134 = vunpack.c.l.b16 %v1119
          %v1135 = vunpack.c.l.b16 %v1120
          %v1136 = vunpack.c.l.b16 %v1121
          %v1137 = vunpack.c.l.b16 %v1122
          %v1138 = vpack.c.b16 %v1135, %v1134
          %v1139 = vpack.c.b16 %v1137, %v1136
          %vm1142 = vcmask 261120
          %v1144 = vsel %vm1142, %v1118, 0
          %1146 = vmatprep.subr.bf16.mxu0 0
          %1147 = vmatpush1.bf16.msra.mxu0 %v1138
          %1148 = vmatprep.subr.bf16.mxu0 0
          %1149 = vmatpush1.bf16.msra.mxu0 %v1139
          %1150 = vmatprep.subr.bf16.mxu0 0
          %1151 = vmatpush1.bf16.msra.mxu0 0
          %1152 = vmatprep.subr.bf16.mxu0 0
          %1153 = vmatpush1.bf16.msra.mxu0 0
          %1154 = vmatprep.subr.bf16.mxu0 0
          %1155 = vmatpush1.bf16.msra.mxu0 0
          %1156 = vmatprep.subr.bf16.mxu0 0
          %1157 = vmatpush1.bf16.msra.mxu0 0
          %1158 = vmatprep.subr.bf16.mxu0 0
          %1159 = vmatpush1.bf16.msra.mxu0 0
          %1160 = vmatprep.subr.bf16.mxu0 0
          %1161 = vmatpush1.bf16.msra.mxu0 0
          %1162 = vmatprep.subr.bf16.mxu0 0
          %1163 = vmatpush1.bf16.msra.mxu0 0
          %1164 = vmatprep.subr.bf16.mxu0 0
          %1165 = vmatpush1.bf16.msra.mxu0 0
          %1166 = vmatprep.subr.bf16.mxu0 0
          %1167 = vmatpush1.bf16.msra.mxu0 0
          %1168 = vmatprep.subr.bf16.mxu0 0
          %1169 = vmatpush1.bf16.msra.mxu0 0
          %1170 = vmatprep.subr.bf16.mxu0 0
          %1171 = vmatpush1.bf16.msra.mxu0 0
          %1172 = vmatprep.subr.bf16.mxu0 0
          %1173 = vmatpush1.bf16.msra.mxu0 0
          %1174 = vmatprep.subr.bf16.mxu0 0
          %1175 = vmatpush1.bf16.msra.mxu0 0
          %1176 = vmatprep.subr.bf16.mxu0 0
          %1177 = vmatpush1.bf16.msra.mxu0 0
          %1178 = vmatprep.mubr.bf16.mxu0 0
          %1179 = vmatmul.mubr.bf16.gmra.mrb[0].mxu0 %v1144
          %v1180 = vpop.f32.mrb[0].mxu0
          %v1181 = vadd.f32 %v1128, %v1180
          %v1182 = vpop.f32.mrb[0].mxu0
          %v1183 = vpop.f32.mrb[0].mxu0
          %v1184 = vadd.f32 %v1128, %v1183
          %v1185 = vpop.f32.mrb[0].mxu0
          %1186 = vdwg.mxu0
          %v1187 = vpack.c.bf16 %v1184, %v1181
          %1189 = vrot.lane.b32.xlu0 %v1187, 120
          %v1190 = vpop.permute.xlu0 %1189
          %1191 = vrot.lane.b32.xlu0 %v1187, 112
          %v1192 = vpop.permute.xlu0 %1191
          %1193 = vrot.lane.b32.xlu0 %v1187, 104
          %v1194 = vpop.permute.xlu0 %1193
          %v1195 = vld [vmem:[#allocation20] sm:$0xff]
          %v1196 = vld [vmem:[#allocation20 + $0x8] sm:$0xff]
          %v1197 = vld [vmem:[#allocation20 + $0x10] sm:$0xff]
          %v1198 = vld [vmem:[#allocation20 + $0x18] sm:$0xff]
          %v1199 = vld [vmem:[#allocation20 + $0x20] sm:$0xff]
          %v1200 = vld [vmem:[#allocation20 + $0x28] sm:$0xff]
          %v1201 = vld [vmem:[#allocation20 + $0x30] sm:$0xff]
          %v1202 = vld [vmem:[#allocation20 + $0x38] sm:$0xff]
          %1203 = vrot.lane.b32.xlu0 %v1187, 96
          %v1204 = vpop.permute.xlu0 %1203
          %1205 = vrot.lane.b32.xlu0 %v1190, 96
          %v1206 = vpop.permute.xlu0 %1205
          %1207 = vrot.lane.b32.xlu0 %v1192, 96
          %v1208 = vpop.permute.xlu0 %1207
          %1209 = vrot.lane.b32.xlu0 %v1194, 96
          %v1210 = vpop.permute.xlu0 %1209
          %vm1211 = vcmask 64512
          %v1213 = vsel %vm1211, %v1187, 0
          %v1216 = vsel %vm1211, %v1190, 0
          %v1219 = vsel %vm1211, %v1192, 0
          %v1222 = vsel %vm1211, %v1194, 0
          %v1225 = vsel %vm1211, %v1204, 0
          %v1228 = vsel %vm1211, %v1206, 0
          %v1231 = vsel %vm1211, %v1208, 0
          %v1234 = vsel %vm1211, %v1210, 0
          %1236 = vmatprep.subr.bf16.mxu0 0
          %1237 = vmatpush1.bf16.xpose.msra.mxu0 %v1225
          %1238 = vmatprep.subr.bf16.mxu0 0
          %1239 = vmatpush1.bf16.xpose.msra.mxu0 %v1228
          %1240 = vmatprep.subr.bf16.mxu0 0
          %1241 = vmatpush1.bf16.xpose.msra.mxu0 %v1231
          %1242 = vmatprep.subr.bf16.mxu0 0
          %1243 = vmatpush1.bf16.xpose.msra.mxu0 %v1234
          %1244 = vmatprep.subr.bf16.mxu0 0
          %1245 = vmatpush1.bf16.xpose.msra.mxu0 0
          %1246 = vmatprep.subr.bf16.mxu0 0
          %1247 = vmatpush1.bf16.xpose.msra.mxu0 0
          %1248 = vmatprep.subr.bf16.mxu0 0
          %1249 = vmatpush1.bf16.xpose.msra.mxu0 0
          %1250 = vmatprep.subr.bf16.mxu0 0
          %1251 = vmatpush1.bf16.xpose.msra.mxu0 0
          %1252 = vmatprep.subr.bf16.mxu0 0
          %1253 = vmatpush1.bf16.xpose.msra.mxu0 0
          %1254 = vmatprep.subr.bf16.mxu0 0
          %1255 = vmatpush1.bf16.xpose.msra.mxu0 0
          %1256 = vmatprep.subr.bf16.mxu0 0
          %1257 = vmatpush1.bf16.xpose.msra.mxu0 0
          %1258 = vmatprep.subr.bf16.mxu0 0
          %1259 = vmatpush1.bf16.xpose.msra.mxu0 0
          %1260 = vmatprep.subr.bf16.mxu0 0
          %1261 = vmatpush1.bf16.xpose.msra.mxu0 0
          %1262 = vmatprep.subr.bf16.mxu0 0
          %1263 = vmatpush1.bf16.xpose.msra.mxu0 0
          %1264 = vmatprep.subr.bf16.mxu0 0
          %1265 = vmatpush1.bf16.xpose.msra.mxu0 0
          %1266 = vmatprep.subr.bf16.mxu0 0
          %1267 = vmatpush1.bf16.xpose.msra.mxu0 0
          %1268 = vmatprep.mubr.bf16.mxu0 0
          %1269 = vmatmul.mubr.bf16.gmra.mrb[0].mxu0 %v1213
          %v1270 = vpop.f32.mrb[0].mxu0
          %v1271 = vadd.f32 %v1195, %v1270
          %v1272 = vpop.f32.mrb[0].mxu0
          %v1273 = vpop.f32.mrb[0].mxu0
          %v1274 = vadd.f32 %v1196, %v1273
          %v1275 = vpop.f32.mrb[0].mxu0
          %1276 = vmatprep.mubr.bf16.mxu0 0
          %1277 = vmatmul.mubr.bf16.gmra.mrb[0].mxu0 %v1216
          %v1278 = vpop.f32.mrb[0].mxu0
          %v1279 = vadd.f32 %v1197, %v1278
          %v1280 = vpop.f32.mrb[0].mxu0
          %v1281 = vpop.f32.mrb[0].mxu0
          %v1282 = vadd.f32 %v1198, %v1281
          %v1283 = vpop.f32.mrb[0].mxu0
          %1284 = vmatprep.mubr.bf16.mxu0 0
          %1285 = vmatmul.mubr.bf16.gmra.mrb[0].mxu0 %v1219
          %v1286 = vpop.f32.mrb[0].mxu0
          %v1287 = vadd.f32 %v1199, %v1286
          %v1288 = vpop.f32.mrb[0].mxu0
          %v1289 = vpop.f32.mrb[0].mxu0
          %v1290 = vadd.f32 %v1200, %v1289
          %v1291 = vpop.f32.mrb[0].mxu0
          %1292 = vmatprep.mubr.bf16.mxu0 0
          %1293 = vmatmul.mubr.bf16.gmra.mrb[0].mxu0 %v1222
          %v1294 = vpop.f32.mrb[0].mxu0
          %v1295 = vadd.f32 %v1201, %v1294
          %v1296 = vpop.f32.mrb[0].mxu0
          %v1297 = vpop.f32.mrb[0].mxu0
          %v1298 = vadd.f32 %v1202, %v1297
          %v1299 = vpop.f32.mrb[0].mxu0
          %1300 = vdwg.mxu0
          %v1301 = vmul.f32 %v1271, 1.442695
          %v1302 = vpow.pop %v1301
          %v1303 = vmul.f32 %v1274, 1.442695
          %v1304 = vpow.pop %v1303
          %v1305 = vmul.f32 %v1279, 1.442695
          %v1306 = vpow.pop %v1305
          %v1307 = vmul.f32 %v1282, 1.442695
          %v1308 = vpow.pop %v1307
          %v1309 = vmul.f32 %v1287, 1.442695
          %v1310 = vpow.pop %v1309
          %v1311 = vmul.f32 %v1290, 1.442695
          %v1312 = vpow.pop %v1311
          %v1313 = vmul.f32 %v1295, 1.442695
          %v1314 = vpow.pop %v1313
          %v1315 = vmul.f32 %v1298, 1.442695
          %v1316 = vpow.pop %v1315
          %vm1317 = vcmask 523264
          %v1318 = vsel %vm1317, %v1302, 0.0
          %1319 = vadd.xlane.f32.xlu0 %v1318
          %v1320 = vpop.xlane.xlu0 %1319
          %v1321 = vsel %vm1317, %v1304, 0.0
          %1322 = vadd.xlane.f32.xlu0 %v1321
          %v1323 = vpop.xlane.xlu0 %1322
          %v1324 = vsel %vm1317, %v1306, 0.0
          %1325 = vadd.xlane.f32.xlu0 %v1324
          %v1326 = vpop.xlane.xlu0 %1325
          %v1327 = vsel %vm1317, %v1308, 0.0
          %1328 = vadd.xlane.f32.xlu0 %v1327
          %v1329 = vpop.xlane.xlu0 %1328
          %v1330 = vsel %vm1317, %v1310, 0.0
          %1331 = vadd.xlane.f32.xlu0 %v1330
          %v1332 = vpop.xlane.xlu0 %1331
          %v1333 = vsel %vm1317, %v1312, 0.0
          %1334 = vadd.xlane.f32.xlu0 %v1333
          %v1335 = vpop.xlane.xlu0 %1334
          %v1336 = vsel %vm1317, %v1314, 0.0
          %1337 = vadd.xlane.f32.xlu0 %v1336
          %v1338 = vpop.xlane.xlu0 %1337
          %v1339 = vsel %vm1317, %v1316, 0.0
          %1340 = vadd.xlane.f32.xlu0 %v1339
          %v1341 = vpop.xlane.xlu0 %1340
          %v1342 = vrcp.pop %v1320
          %v1343 = vrcp.pop %v1323
          %v1344 = vrcp.pop %v1326
          %v1345 = vrcp.pop %v1329
          %v1346 = vrcp.pop %v1332
          %v1347 = vrcp.pop %v1335
          %v1348 = vrcp.pop %v1338
          %v1349 = vrcp.pop %v1341
          %v1350 = vmul.f32 %v1302, %v1342
          %v1351 = vmul.f32 %v1304, %v1343
          %v1352 = vmul.f32 %v1306, %v1344
          %v1353 = vmul.f32 %v1308, %v1345
          %v1354 = vmul.f32 %v1310, %v1346
          %v1355 = vmul.f32 %v1312, %v1347
          %v1356 = vmul.f32 %v1314, %v1348
          %v1357 = vmul.f32 %v1316, %v1349
          %v1358 = vpack.c.bf16 %v1351, %v1350
          %v1359 = vpack.c.bf16 %v1353, %v1352
          %v1360 = vpack.c.bf16 %v1355, %v1354
          %v1361 = vpack.c.bf16 %v1357, %v1356
          %1362 = vrot.lane.b32.xlu0 %v1187, 64
          %v1363 = vpop.permute.xlu0 %1362
          %1364 = vrot.lane.b32.xlu0 %v1190, 64
          %v1365 = vpop.permute.xlu0 %1364
          %1366 = vrot.lane.b32.xlu0 %v1192, 64
          %v1367 = vpop.permute.xlu0 %1366
          %1368 = vrot.lane.b32.xlu0 %v1194, 64
          %v1369 = vpop.permute.xlu0 %1368
          %v1375 = vsel %vm1317, %v1358, 0
          %v1378 = vsel %vm1317, %v1359, 0
          %v1381 = vsel %vm1317, %v1360, 0
          %v1384 = vsel %vm1317, %v1361, 0
          %1386 = vmatprep.subr.bf16.mxu0 0
          %1387 = vmatpush1.bf16.msra.mxu0 %v1363
          %1388 = vmatprep.subr.bf16.mxu0 0
          %1389 = vmatpush1.bf16.msra.mxu0 %v1365
          %1390 = vmatprep.subr.bf16.mxu0 0
          %1391 = vmatpush1.bf16.msra.mxu0 %v1367
          %1392 = vmatprep.subr.bf16.mxu0 0
          %1393 = vmatpush1.bf16.msra.mxu0 %v1369
          %1394 = vmatprep.subr.bf16.mxu0 0
          %1395 = vmatpush1.bf16.msra.mxu0 0
          %1396 = vmatprep.subr.bf16.mxu0 0
          %1397 = vmatpush1.bf16.msra.mxu0 0
          %1398 = vmatprep.subr.bf16.mxu0 0
          %1399 = vmatpush1.bf16.msra.mxu0 0
          %1400 = vmatprep.subr.bf16.mxu0 0
          %1401 = vmatpush1.bf16.msra.mxu0 0
          %1402 = vmatprep.subr.bf16.mxu0 0
          %1403 = vmatpush1.bf16.msra.mxu0 0
          %1404 = vmatprep.subr.bf16.mxu0 0
          %1405 = vmatpush1.bf16.msra.mxu0 0
          %1406 = vmatprep.subr.bf16.mxu0 0
          %1407 = vmatpush1.bf16.msra.mxu0 0
          %1408 = vmatprep.subr.bf16.mxu0 0
          %1409 = vmatpush1.bf16.msra.mxu0 0
          %1410 = vmatprep.subr.bf16.mxu0 0
          %1411 = vmatpush1.bf16.msra.mxu0 0
          %1412 = vmatprep.subr.bf16.mxu0 0
          %1413 = vmatpush1.bf16.msra.mxu0 0
          %1414 = vmatprep.subr.bf16.mxu0 0
          %1415 = vmatpush1.bf16.msra.mxu0 0
          %1416 = vmatprep.subr.bf16.mxu0 0
          %1417 = vmatpush1.bf16.msra.mxu0 0
          %1418 = vmatprep.mubr.bf16.mxu0 0
          %1419 = vmatmul.mubr.bf16.gmra.mrb[0].mxu0 %v1375
          %v1420 = vpop.f32.mrb[0].mxu0
          %v1421 = vadd.f32 0.0, %v1420
          %v1422 = vpop.f32.mrb[0].mxu0
          %v1423 = vpop.f32.mrb[0].mxu0
          %v1424 = vadd.f32 0.0, %v1423
          %v1425 = vpop.f32.mrb[0].mxu0
          %1426 = vmatprep.mubr.bf16.mxu0 0
          %1427 = vmatmul.mubr.bf16.gmra.mrb[0].mxu0 %v1378
          %v1428 = vpop.f32.mrb[0].mxu0
          %v1429 = vadd.f32 0.0, %v1428
          %v1430 = vpop.f32.mrb[0].mxu0
          %v1431 = vpop.f32.mrb[0].mxu0
          %v1432 = vadd.f32 0.0, %v1431
          %v1433 = vpop.f32.mrb[0].mxu0
          %1434 = vmatprep.mubr.bf16.mxu0 0
          %1435 = vmatmul.mubr.bf16.gmra.mrb[0].mxu0 %v1381
          %v1436 = vpop.f32.mrb[0].mxu0
          %v1437 = vadd.f32 0.0, %v1436
          %v1438 = vpop.f32.mrb[0].mxu0
          %v1439 = vpop.f32.mrb[0].mxu0
          %v1440 = vadd.f32 0.0, %v1439
          %v1441 = vpop.f32.mrb[0].mxu0
          %1442 = vmatprep.mubr.bf16.mxu0 0
          %1443 = vmatmul.mubr.bf16.gmra.mrb[0].mxu0 %v1384
          %v1444 = vpop.f32.mrb[0].mxu0
          %v1445 = vadd.f32 0.0, %v1444
          %v1446 = vpop.f32.mrb[0].mxu0
          %v1447 = vpop.f32.mrb[0].mxu0
          %v1448 = vadd.f32 0.0, %v1447
          %v1449 = vpop.f32.mrb[0].mxu0
          %1450 = vdwg.mxu0
          %1453 = vrot.lane.b32.xlu0 %v1429, 8
          %v1454 = vpop.permute.xlu0 %1453
          %1455 = vrot.lane.b32.xlu0 %v1432, 8
          %v1456 = vpop.permute.xlu0 %1455
          %1461 = vrot.lane.b32.xlu0 %v1437, 16
          %v1462 = vpop.permute.xlu0 %1461
          %1463 = vrot.lane.b32.xlu0 %v1440, 16
          %v1464 = vpop.permute.xlu0 %1463
          %1469 = vrot.lane.b32.xlu0 %v1445, 24
          %v1470 = vpop.permute.xlu0 %1469
          %1471 = vrot.lane.b32.xlu0 %v1448, 24
          %v1472 = vpop.permute.xlu0 %1471
          %v1475 = vsel %vm1211, %v1421, %v1454
          %v1476 = vsel %vm1211, %v1424, %v1456
          %vm1477 = vcmask 130048
          %v1478 = vsel %vm1477, %v1475, %v1462
          %v1479 = vsel %vm1477, %v1476, %v1464
          %vm1480 = vcmask 195584
          %v1481 = vsel %vm1480, %v1478, %v1470
          %v1482 = vsel %vm1480, %v1479, %v1472
          %v1483 = vpack.c.bf16 %v1482, %v1481
          %v1484 = vld [vmem:[%s1006] sm:$0xf]
          %v1485 = vld [vmem:[%s1006 + $0x4] sm:$0xf]
          %v1486 = vld [vmem:[%s1006 + $0x8] sm:$0xf]
          %v1487 = vld [vmem:[%s1006 + $0xc] sm:$0xf]
          %v1488 = vld [vmem:[%s1009] sm:$0x1]
          %v1490 = vlaneseq
          %v1491 = vshrl.u32 %v1490, 7
          %v1492 = vsub.s32 0, %v1491
          %v1493 = vrot.slane %v1488, %v1492
          %v1499 = vunpack.c.l.b16 %v1484
          %v1500 = vunpack.c.l.b16 %v1485
          %v1501 = vunpack.c.l.b16 %v1486
          %v1502 = vunpack.c.l.b16 %v1487
          %v1503 = vpack.c.b16 %v1500, %v1499
          %v1504 = vpack.c.b16 %v1502, %v1501
          %v1508 = vsel %vm1142, %v1483, 0
          %1510 = vmatprep.subr.bf16.mxu0 0
          %1511 = vmatpush1.bf16.msra.mxu0 %v1503
          %1512 = vmatprep.subr.bf16.mxu0 0
          %1513 = vmatpush1.bf16.msra.mxu0 %v1504
          %1514 = vmatprep.subr.bf16.mxu0 0
          %1515 = vmatpush1.bf16.msra.mxu0 0
          %1516 = vmatprep.subr.bf16.mxu0 0
          %1517 = vmatpush1.bf16.msra.mxu0 0
          %1518 = vmatprep.subr.bf16.mxu0 0
          %1519 = vmatpush1.bf16.msra.mxu0 0
          %1520 = vmatprep.subr.bf16.mxu0 0
          %1521 = vmatpush1.bf16.msra.mxu0 0
          %1522 = vmatprep.subr.bf16.mxu0 0
          %1523 = vmatpush1.bf16.msra.mxu0 0
          %1524 = vmatprep.subr.bf16.mxu0 0
          %1525 = vmatpush1.bf16.msra.mxu0 0
          %1526 = vmatprep.subr.bf16.mxu0 0
          %1527 = vmatpush1.bf16.msra.mxu0 0
          %1528 = vmatprep.subr.bf16.mxu0 0
          %1529 = vmatpush1.bf16.msra.mxu0 0
          %1530 = vmatprep.subr.bf16.mxu0 0
          %1531 = vmatpush1.bf16.msra.mxu0 0
          %1532 = vmatprep.subr.bf16.mxu0 0
          %1533 = vmatpush1.bf16.msra.mxu0 0
          %1534 = vmatprep.subr.bf16.mxu0 0
          %1535 = vmatpush1.bf16.msra.mxu0 0
          %1536 = vmatprep.subr.bf16.mxu0 0
          %1537 = vmatpush1.bf16.msra.mxu0 0
          %1538 = vmatprep.subr.bf16.mxu0 0
          %1539 = vmatpush1.bf16.msra.mxu0 0
          %1540 = vmatprep.subr.bf16.mxu0 0
          %1541 = vmatpush1.bf16.msra.mxu0 0
          %1542 = vmatprep.mubr.bf16.mxu0 0
          %1543 = vmatmul.mubr.bf16.gmra.mrb[0].mxu0 %v1508
          %v1544 = vpop.f32.mrb[0].mxu0
          %v1545 = vadd.f32 %v1493, %v1544
          %v1546 = vpop.f32.mrb[0].mxu0
          %v1547 = vpop.f32.mrb[0].mxu0
          %v1548 = vadd.f32 %v1493, %v1547
          %v1549 = vpop.f32.mrb[0].mxu0
          %1550 = vdwg.mxu0
          %v1551 = vadd.f32 %v1116, %v1545
          %v1552 = vadd.f32 %v1117, %v1548
          %v1553 = vld [vmem:[%s864] sm:$0x1]
          %v1554 = vld [vmem:[%s872] sm:$0x1]
          %v1555 = vsel %vm1142, %v1551, 0.0
          %1556 = vadd.xlane.f32.xlu0 %v1555
          %v1557 = vpop.xlane.xlu0 %1556
          %v1558 = vsel %vm1142, %v1552, 0.0
          %1559 = vadd.xlane.f32.xlu0 %v1558
          %v1560 = vpop.xlane.xlu0 %1559
          %v1561 = vrcp.pop 32.0
          %v1562 = vmul.f32 %v1557, %v1561
          %v1563 = vmul.f32 %v1560, %v1561
          %v1564 = vsub.f32 %v1551, %v1562
          %v1565 = vsub.f32 %v1552, %v1563
          %v1566 = vmul.f32 %v1564, %v1564
          %v1567 = vmul.f32 %v1565, %v1565
          %v1568 = vsel %vm1142, %v1566, 0.0
          %1569 = vadd.xlane.f32.xlu0 %v1568
          %v1570 = vpop.xlane.xlu0 %1569
          %v1571 = vsel %vm1142, %v1567, 0.0
          %1572 = vadd.xlane.f32.xlu0 %v1571
          %v1573 = vpop.xlane.xlu0 %1572
          %v1574 = vmul.f32 %v1570, %v1561
          %v1575 = vmul.f32 %v1573, %v1561
          %v1576 = vadd.f32 %v1574, 1e-05
          %v1577 = vadd.f32 %v1575, 1e-05
          %v1578 = vrsqrt.pop %v1576
          %v1579 = vrsqrt.pop %v1577
          %v1580 = vmul.f32 %v1564, %v1578
          %v1581 = vmul.f32 %v1565, %v1579
          %v1583 = vlaneseq
          %v1584 = vshrl.u32 %v1583, 7
          %v1585 = vsub.s32 0, %v1584
          %v1586 = vrot.slane %v1553, %v1585
          %v1588 = vmul.f32 %v1580, %v1586
          %v1589 = vmul.f32 %v1581, %v1586
          %v1591 = vlaneseq
          %v1592 = vshrl.u32 %v1591, 7
          %v1593 = vsub.s32 0, %v1592
          %v1594 = vrot.slane %v1554, %v1593
          %v1596 = vadd.f32 %v1588, %v1594
          %v1597 = vadd.f32 %v1589, %v1594
          %1598 = vst.msk [vmem:[#allocation2] sm:$0xff] %vm1142, %v1596
          %1599 = vst.msk [vmem:[#allocation2 + $0x8] sm:$0xff] %vm1142, %v1597
          %1600 = vst.msk [vmem:[#allocation3] sm:$0xff] %vm1142, 0.0
          %1601 = vst.msk [vmem:[#allocation3 + $0x8] sm:$0xff] %vm1142, 0.0
        $region152: #{transformer_vae_encoder.1} parent=95 // pred_fallthru
          _
        %v1602 = vld [vmem:[#allocation2] sm:$0xff]
        %v1603 = vld [vmem:[#allocation2 + $0x8] sm:$0xff]
        %v1604 = vpack.c.bf16 %v1603, %v1602
        %v1605 = vld [vmem:[%s830] sm:$0xff]
        %v1606 = vld [vmem:[%s830 + $0x8] sm:$0xff]
        %v1607 = vld [vmem:[%s830 + $0x10] sm:$0xff]
        %v1608 = vld [vmem:[%s830 + $0x18] sm:$0xff]
        %v1609 = vld [vmem:[%s830 + $0x20] sm:$0xff]
        %v1610 = vld [vmem:[%s830 + $0x28] sm:$0xff]
        %v1611 = vld [vmem:[%s830 + $0x30] sm:$0xff]
        %v1612 = vld [vmem:[%s830 + $0x38] sm:$0xff]
        %v1613 = vld [vmem:[%s830 + $0x40] sm:$0xff]
        %v1614 = vld [vmem:[%s830 + $0x48] sm:$0xff]
        %v1615 = vld [vmem:[%s830 + $0x50] sm:$0xff]
        %v1616 = vld [vmem:[%s830 + $0x58] sm:$0xff]
        %v1617 = vld [vmem:[%s830 + $0x60] sm:$0xff]
        %v1618 = vld [vmem:[%s830 + $0x68] sm:$0xff]
        %v1619 = vld [vmem:[%s830 + $0x70] sm:$0xff]
        %v1620 = vld [vmem:[%s830 + $0x78] sm:$0xff]
        %v1621 = vld [vmem:[%s839] sm:$0xff]
        %v1623 = vlaneseq
        %v1624 = vshrl.u32 %v1623, 7
        %v1625 = vsub.s32 0, %v1624
        %v1626 = vrot.slane %v1621, %v1625
        %v1627 = vlaneseq
        %v1628 = vshrl.u32 %v1627, 7
        %v1629 = vsub.s32 1, %v1628
        %v1630 = vrot.slane %v1621, %v1629
        %v1631 = vlaneseq
        %v1632 = vshrl.u32 %v1631, 7
        %v1633 = vsub.s32 2, %v1632
        %v1634 = vrot.slane %v1621, %v1633
        %v1635 = vlaneseq
        %v1636 = vshrl.u32 %v1635, 7
        %v1637 = vsub.s32 3, %v1636
        %v1638 = vrot.slane %v1621, %v1637
        %v1639 = vlaneseq
        %v1640 = vshrl.u32 %v1639, 7
        %v1641 = vsub.s32 4, %v1640
        %v1642 = vrot.slane %v1621, %v1641
        %v1643 = vlaneseq
        %v1644 = vshrl.u32 %v1643, 7
        %v1645 = vsub.s32 5, %v1644
        %v1646 = vrot.slane %v1621, %v1645
        %v1647 = vlaneseq
        %v1648 = vshrl.u32 %v1647, 7
        %v1649 = vsub.s32 6, %v1648
        %v1650 = vrot.slane %v1621, %v1649
        %v1651 = vlaneseq
        %v1652 = vshrl.u32 %v1651, 7
        %v1653 = vsub.s32 7, %v1652
        %v1654 = vrot.slane %v1621, %v1653
        %v1679 = vunpack.c.l.b16 %v1605
        %v1680 = vunpack.c.h.b16 %v1605
        %v1681 = vunpack.c.l.b16 %v1606
        %v1682 = vunpack.c.h.b16 %v1606
        %v1683 = vunpack.c.l.b16 %v1607
        %v1684 = vunpack.c.h.b16 %v1607
        %v1685 = vunpack.c.l.b16 %v1608
        %v1686 = vunpack.c.h.b16 %v1608
        %v1687 = vunpack.c.l.b16 %v1609
        %v1688 = vunpack.c.h.b16 %v1609
        %v1689 = vunpack.c.l.b16 %v1610
        %v1690 = vunpack.c.h.b16 %v1610
        %v1691 = vunpack.c.l.b16 %v1611
        %v1692 = vunpack.c.h.b16 %v1611
        %v1693 = vunpack.c.l.b16 %v1612
        %v1694 = vunpack.c.h.b16 %v1612
        %v1695 = vunpack.c.l.b16 %v1613
        %v1696 = vunpack.c.h.b16 %v1613
        %v1697 = vunpack.c.l.b16 %v1614
        %v1698 = vunpack.c.h.b16 %v1614
        %v1699 = vunpack.c.l.b16 %v1615
        %v1700 = vunpack.c.h.b16 %v1615
        %v1701 = vunpack.c.l.b16 %v1616
        %v1702 = vunpack.c.h.b16 %v1616
        %v1703 = vunpack.c.l.b16 %v1617
        %v1704 = vunpack.c.h.b16 %v1617
        %v1705 = vunpack.c.l.b16 %v1618
        %v1706 = vunpack.c.h.b16 %v1618
        %v1707 = vunpack.c.l.b16 %v1619
        %v1708 = vunpack.c.h.b16 %v1619
        %v1709 = vunpack.c.l.b16 %v1620
        %v1710 = vunpack.c.h.b16 %v1620
        %v1711 = vpack.c.b16 %v1687, %v1679
        %v1712 = vpack.c.b16 %v1688, %v1680
        %v1713 = vpack.c.b16 %v1689, %v1681
        %v1714 = vpack.c.b16 %v1690, %v1682
        %v1715 = vpack.c.b16 %v1691, %v1683
        %v1716 = vpack.c.b16 %v1692, %v1684
        %v1717 = vpack.c.b16 %v1693, %v1685
        %v1718 = vpack.c.b16 %v1694, %v1686
        %v1719 = vpack.c.b16 %v1703, %v1695
        %v1720 = vpack.c.b16 %v1704, %v1696
        %v1721 = vpack.c.b16 %v1705, %v1697
        %v1722 = vpack.c.b16 %v1706, %v1698
        %v1723 = vpack.c.b16 %v1707, %v1699
        %v1724 = vpack.c.b16 %v1708, %v1700
        %v1725 = vpack.c.b16 %v1709, %v1701
        %v1726 = vpack.c.b16 %v1710, %v1702
        %vm1743 = vcmask 261120
        %v1745 = vsel %vm1743, %v1604, 0
        %1747 = vmatprep.subr.bf16.mxu0 %v1712
        %1748 = vmatpush1.bf16.msra.mxu0 %v1711
        %1749 = vmatprep.subr.bf16.mxu0 %v1720
        %1750 = vmatpush1.bf16.msra.mxu0 %v1719
        %1751 = vmatprep.subr.bf16.mxu0 0
        %1752 = vmatpush1.bf16.msra.mxu0 0
        %1753 = vmatprep.subr.bf16.mxu0 0
        %1754 = vmatpush1.bf16.msra.mxu0 0
        %1755 = vmatprep.subr.bf16.mxu0 0
        %1756 = vmatpush1.bf16.msra.mxu0 0
        %1757 = vmatprep.subr.bf16.mxu0 0
        %1758 = vmatpush1.bf16.msra.mxu0 0
        %1759 = vmatprep.subr.bf16.mxu0 0
        %1760 = vmatpush1.bf16.msra.mxu0 0
        %1761 = vmatprep.subr.bf16.mxu0 0
        %1762 = vmatpush1.bf16.msra.mxu0 0
        %1763 = vmatprep.subr.bf16.mxu0 0
        %1764 = vmatpush1.bf16.msra.mxu0 0
        %1765 = vmatprep.subr.bf16.mxu0 0
        %1766 = vmatpush1.bf16.msra.mxu0 0
        %1767 = vmatprep.subr.bf16.mxu0 0
        %1768 = vmatpush1.bf16.msra.mxu0 0
        %1769 = vmatprep.subr.bf16.mxu0 0
        %1770 = vmatpush1.bf16.msra.mxu0 0
        %1771 = vmatprep.subr.bf16.mxu0 0
        %1772 = vmatpush1.bf16.msra.mxu0 0
        %1773 = vmatprep.subr.bf16.mxu0 0
        %1774 = vmatpush1.bf16.msra.mxu0 0
        %1775 = vmatprep.subr.bf16.mxu0 0
        %1776 = vmatpush1.bf16.msra.mxu0 0
        %1777 = vmatprep.subr.bf16.mxu0 0
        %1778 = vmatpush1.bf16.msra.mxu0 0
        %1779 = vmatprep.mubr.bf16.mxu0 0
        %1780 = vmatmul.mubr.bf16.gmra.mrb[0].mxu0 %v1745
        %v1781 = vpop.f32.mrb[0].mxu0
        %v1782 = vadd.f32 %v1626, %v1781
        %v1783 = vpop.f32.mrb[0].mxu0
        %v1784 = vadd.f32 %v1630, %v1783
        %v1785 = vpop.f32.mrb[0].mxu0
        %v1786 = vadd.f32 %v1626, %v1785
        %v1787 = vpop.f32.mrb[0].mxu0
        %v1788 = vadd.f32 %v1630, %v1787
        %1789 = vdwg.mxu0
        %1790 = vmatprep.subr.bf16.mxu0 %v1714
        %1791 = vmatpush1.bf16.msra.mxu0 %v1713
        %1792 = vmatprep.subr.bf16.mxu0 %v1722
        %1793 = vmatpush1.bf16.msra.mxu0 %v1721
        %1794 = vmatprep.subr.bf16.mxu0 0
        %1795 = vmatpush1.bf16.msra.mxu0 0
        %1796 = vmatprep.subr.bf16.mxu0 0
        %1797 = vmatpush1.bf16.msra.mxu0 0
        %1798 = vmatprep.subr.bf16.mxu0 0
        %1799 = vmatpush1.bf16.msra.mxu0 0
        %1800 = vmatprep.subr.bf16.mxu0 0
        %1801 = vmatpush1.bf16.msra.mxu0 0
        %1802 = vmatprep.subr.bf16.mxu0 0
        %1803 = vmatpush1.bf16.msra.mxu0 0
        %1804 = vmatprep.subr.bf16.mxu0 0
        %1805 = vmatpush1.bf16.msra.mxu0 0
        %1806 = vmatprep.subr.bf16.mxu0 0
        %1807 = vmatpush1.bf16.msra.mxu0 0
        %1808 = vmatprep.subr.bf16.mxu0 0
        %1809 = vmatpush1.bf16.msra.mxu0 0
        %1810 = vmatprep.subr.bf16.mxu0 0
        %1811 = vmatpush1.bf16.msra.mxu0 0
        %1812 = vmatprep.subr.bf16.mxu0 0
        %1813 = vmatpush1.bf16.msra.mxu0 0
        %1814 = vmatprep.subr.bf16.mxu0 0
        %1815 = vmatpush1.bf16.msra.mxu0 0
        %1816 = vmatprep.subr.bf16.mxu0 0
        %1817 = vmatpush1.bf16.msra.mxu0 0
        %1818 = vmatprep.subr.bf16.mxu0 0
        %1819 = vmatpush1.bf16.msra.mxu0 0
        %1820 = vmatprep.subr.bf16.mxu0 0
        %1821 = vmatpush1.bf16.msra.mxu0 0
        %1822 = vmatprep.mubr.bf16.mxu0 0
        %1823 = vmatmul.mubr.bf16.gmra.mrb[0].mxu0 %v1745
        %v1824 = vpop.f32.mrb[0].mxu0
        %v1825 = vadd.f32 %v1634, %v1824
        %v1826 = vpop.f32.mrb[0].mxu0
        %v1827 = vadd.f32 %v1638, %v1826
        %v1828 = vpop.f32.mrb[0].mxu0
        %v1829 = vadd.f32 %v1634, %v1828
        %v1830 = vpop.f32.mrb[0].mxu0
        %v1831 = vadd.f32 %v1638, %v1830
        %1832 = vdwg.mxu0
        %1833 = vmatprep.subr.bf16.mxu0 %v1716
        %1834 = vmatpush1.bf16.msra.mxu0 %v1715
        %1835 = vmatprep.subr.bf16.mxu0 %v1724
        %1836 = vmatpush1.bf16.msra.mxu0 %v1723
        %1837 = vmatprep.subr.bf16.mxu0 0
        %1838 = vmatpush1.bf16.msra.mxu0 0
        %1839 = vmatprep.subr.bf16.mxu0 0
        %1840 = vmatpush1.bf16.msra.mxu0 0
        %1841 = vmatprep.subr.bf16.mxu0 0
        %1842 = vmatpush1.bf16.msra.mxu0 0
        %1843 = vmatprep.subr.bf16.mxu0 0
        %1844 = vmatpush1.bf16.msra.mxu0 0
        %1845 = vmatprep.subr.bf16.mxu0 0
        %1846 = vmatpush1.bf16.msra.mxu0 0
        %1847 = vmatprep.subr.bf16.mxu0 0
        %1848 = vmatpush1.bf16.msra.mxu0 0
        %1849 = vmatprep.subr.bf16.mxu0 0
        %1850 = vmatpush1.bf16.msra.mxu0 0
        %1851 = vmatprep.subr.bf16.mxu0 0
        %1852 = vmatpush1.bf16.msra.mxu0 0
        %1853 = vmatprep.subr.bf16.mxu0 0
        %1854 = vmatpush1.bf16.msra.mxu0 0
        %1855 = vmatprep.subr.bf16.mxu0 0
        %1856 = vmatpush1.bf16.msra.mxu0 0
        %1857 = vmatprep.subr.bf16.mxu0 0
        %1858 = vmatpush1.bf16.msra.mxu0 0
        %1859 = vmatprep.subr.bf16.mxu0 0
        %1860 = vmatpush1.bf16.msra.mxu0 0
        %1861 = vmatprep.subr.bf16.mxu0 0
        %1862 = vmatpush1.bf16.msra.mxu0 0
        %1863 = vmatprep.subr.bf16.mxu0 0
        %1864 = vmatpush1.bf16.msra.mxu0 0
        %1865 = vmatprep.mubr.bf16.mxu0 0
        %1866 = vmatmul.mubr.bf16.gmra.mrb[0].mxu0 %v1745
        %v1867 = vpop.f32.mrb[0].mxu0
        %v1868 = vadd.f32 %v1642, %v1867
        %v1869 = vpop.f32.mrb[0].mxu0
        %v1870 = vadd.f32 %v1646, %v1869
        %v1871 = vpop.f32.mrb[0].mxu0
        %v1872 = vadd.f32 %v1642, %v1871
        %v1873 = vpop.f32.mrb[0].mxu0
        %v1874 = vadd.f32 %v1646, %v1873
        %1875 = vdwg.mxu0
        %1876 = vmatprep.subr.bf16.mxu0 %v1718
        %1877 = vmatpush1.bf16.msra.mxu0 %v1717
        %1878 = vmatprep.subr.bf16.mxu0 %v1726
        %1879 = vmatpush1.bf16.msra.mxu0 %v1725
        %1880 = vmatprep.subr.bf16.mxu0 0
        %1881 = vmatpush1.bf16.msra.mxu0 0
        %1882 = vmatprep.subr.bf16.mxu0 0
        %1883 = vmatpush1.bf16.msra.mxu0 0
        %1884 = vmatprep.subr.bf16.mxu0 0
        %1885 = vmatpush1.bf16.msra.mxu0 0
        %1886 = vmatprep.subr.bf16.mxu0 0
        %1887 = vmatpush1.bf16.msra.mxu0 0
        %1888 = vmatprep.subr.bf16.mxu0 0
        %1889 = vmatpush1.bf16.msra.mxu0 0
        %1890 = vmatprep.subr.bf16.mxu0 0
        %1891 = vmatpush1.bf16.msra.mxu0 0
        %1892 = vmatprep.subr.bf16.mxu0 0
        %1893 = vmatpush1.bf16.msra.mxu0 0
        %1894 = vmatprep.subr.bf16.mxu0 0
        %1895 = vmatpush1.bf16.msra.mxu0 0
        %1896 = vmatprep.subr.bf16.mxu0 0
        %1897 = vmatpush1.bf16.msra.mxu0 0
        %1898 = vmatprep.subr.bf16.mxu0 0
        %1899 = vmatpush1.bf16.msra.mxu0 0
        %1900 = vmatprep.subr.bf16.mxu0 0
        %1901 = vmatpush1.bf16.msra.mxu0 0
        %1902 = vmatprep.subr.bf16.mxu0 0
        %1903 = vmatpush1.bf16.msra.mxu0 0
        %1904 = vmatprep.subr.bf16.mxu0 0
        %1905 = vmatpush1.bf16.msra.mxu0 0
        %1906 = vmatprep.subr.bf16.mxu0 0
        %1907 = vmatpush1.bf16.msra.mxu0 0
        %1908 = vmatprep.mubr.bf16.mxu0 0
        %1909 = vmatmul.mubr.bf16.gmra.mrb[0].mxu0 %v1745
        %v1910 = vpop.f32.mrb[0].mxu0
        %v1911 = vadd.f32 %v1650, %v1910
        %v1912 = vpop.f32.mrb[0].mxu0
        %v1913 = vadd.f32 %v1654, %v1912
        %v1914 = vpop.f32.mrb[0].mxu0
        %v1915 = vadd.f32 %v1650, %v1914
        %v1916 = vpop.f32.mrb[0].mxu0
        %v1917 = vadd.f32 %v1654, %v1916
        %1918 = vdwg.mxu0
        %v1919 = vmax.f32 %v1782, 0.0
        %v1920 = vmax.f32 %v1784, 0.0
        %v1921 = vmax.f32 %v1825, 0.0
        %v1922 = vmax.f32 %v1827, 0.0
        %v1923 = vmax.f32 %v1868, 0.0
        %v1924 = vmax.f32 %v1870, 0.0
        %v1925 = vmax.f32 %v1911, 0.0
        %v1926 = vmax.f32 %v1913, 0.0
        %v1927 = vmax.f32 %v1786, 0.0
        %v1928 = vmax.f32 %v1788, 0.0
        %v1929 = vmax.f32 %v1829, 0.0
        %v1930 = vmax.f32 %v1831, 0.0
        %v1931 = vmax.f32 %v1872, 0.0
        %v1932 = vmax.f32 %v1874, 0.0
        %v1933 = vmax.f32 %v1915, 0.0
        %v1934 = vmax.f32 %v1917, 0.0
        %v1935 = vpack.c.bf16 %v1927, %v1919
        %v1936 = vpack.c.bf16 %v1928, %v1920
        %v1937 = vpack.c.bf16 %v1929, %v1921
        %v1938 = vpack.c.bf16 %v1930, %v1922
        %v1939 = vpack.c.bf16 %v1931, %v1923
        %v1940 = vpack.c.bf16 %v1932, %v1924
        %v1941 = vpack.c.bf16 %v1933, %v1925
        %v1942 = vpack.c.bf16 %v1934, %v1926
        %v1943 = vld [vmem:[#allocation3] sm:$0xff]
        %v1944 = vld [vmem:[#allocation3 + $0x8] sm:$0xff]
        %v1945 = vld [vmem:[%s848] sm:$0xff]
        %v1946 = vld [vmem:[%s848 + $0x8] sm:$0xff]
        %v1947 = vld [vmem:[%s848 + $0x10] sm:$0xff]
        %v1948 = vld [vmem:[%s848 + $0x18] sm:$0xff]
        %v1949 = vld [vmem:[%s848 + $0x20] sm:$0xff]
        %v1950 = vld [vmem:[%s848 + $0x28] sm:$0xff]
        %v1951 = vld [vmem:[%s848 + $0x30] sm:$0xff]
        %v1952 = vld [vmem:[%s848 + $0x38] sm:$0xff]
        %v1953 = vld [vmem:[%s848 + $0x40] sm:$0xff]
        %v1954 = vld [vmem:[%s848 + $0x48] sm:$0xff]
        %v1955 = vld [vmem:[%s848 + $0x50] sm:$0xff]
        %v1956 = vld [vmem:[%s848 + $0x58] sm:$0xff]
        %v1957 = vld [vmem:[%s848 + $0x60] sm:$0xff]
        %v1958 = vld [vmem:[%s848 + $0x68] sm:$0xff]
        %v1959 = vld [vmem:[%s848 + $0x70] sm:$0xff]
        %v1960 = vld [vmem:[%s848 + $0x78] sm:$0xff]
        %v1977 = vunpack.c.l.b16 %v1945
        %v1978 = vunpack.c.h.b16 %v1945
        %v1979 = vunpack.c.l.b16 %v1946
        %v1980 = vunpack.c.h.b16 %v1946
        %v1981 = vunpack.c.l.b16 %v1947
        %v1982 = vunpack.c.h.b16 %v1947
        %v1983 = vunpack.c.l.b16 %v1948
        %v1984 = vunpack.c.h.b16 %v1948
        %v1985 = vunpack.c.l.b16 %v1949
        %v1986 = vunpack.c.h.b16 %v1949
        %v1987 = vunpack.c.l.b16 %v1950
        %v1988 = vunpack.c.h.b16 %v1950
        %v1989 = vunpack.c.l.b16 %v1951
        %v1990 = vunpack.c.h.b16 %v1951
        %v1991 = vunpack.c.l.b16 %v1952
        %v1992 = vunpack.c.h.b16 %v1952
        %v1993 = vunpack.c.l.b16 %v1953
        %v1994 = vunpack.c.h.b16 %v1953
        %v1995 = vunpack.c.l.b16 %v1954
        %v1996 = vunpack.c.h.b16 %v1954
        %v1997 = vunpack.c.l.b16 %v1955
        %v1998 = vunpack.c.h.b16 %v1955
        %v1999 = vunpack.c.l.b16 %v1956
        %v2000 = vunpack.c.h.b16 %v1956
        %v2001 = vunpack.c.l.b16 %v1957
        %v2002 = vunpack.c.h.b16 %v1957
        %v2003 = vunpack.c.l.b16 %v1958
        %v2004 = vunpack.c.h.b16 %v1958
        %v2005 = vunpack.c.l.b16 %v1959
        %v2006 = vunpack.c.h.b16 %v1959
        %v2007 = vunpack.c.l.b16 %v1960
        %v2008 = vunpack.c.h.b16 %v1960
        %v2009 = vpack.c.b16 %v1985, %v1977
        %v2010 = vpack.c.b16 %v1986, %v1978
        %v2011 = vpack.c.b16 %v1987, %v1979
        %v2012 = vpack.c.b16 %v1988, %v1980
        %v2013 = vpack.c.b16 %v1989, %v1981
        %v2014 = vpack.c.b16 %v1990, %v1982
        %v2015 = vpack.c.b16 %v1991, %v1983
        %v2016 = vpack.c.b16 %v1992, %v1984
        %v2017 = vpack.c.b16 %v2001, %v1993
        %v2018 = vpack.c.b16 %v2002, %v1994
        %v2019 = vpack.c.b16 %v2003, %v1995
        %v2020 = vpack.c.b16 %v2004, %v1996
        %v2021 = vpack.c.b16 %v2005, %v1997
        %v2022 = vpack.c.b16 %v2006, %v1998
        %v2023 = vpack.c.b16 %v2007, %v1999
        %v2024 = vpack.c.b16 %v2008, %v2000
        %2041 = vmatprep.subr.bf16.mxu0 %v2010
        %2042 = vmatpush1.bf16.xpose.msra.mxu0 %v2009
        %2043 = vmatprep.subr.bf16.mxu0 %v2018
        %2044 = vmatpush1.bf16.xpose.msra.mxu0 %v2017
        %2045 = vmatprep.subr.bf16.mxu0 0
        %2046 = vmatpush1.bf16.xpose.msra.mxu0 0
        %2047 = vmatprep.subr.bf16.mxu0 0
        %2048 = vmatpush1.bf16.xpose.msra.mxu0 0
        %2049 = vmatprep.subr.bf16.mxu0 0
        %2050 = vmatpush1.bf16.xpose.msra.mxu0 0
        %2051 = vmatprep.subr.bf16.mxu0 0
        %2052 = vmatpush1.bf16.xpose.msra.mxu0 0
        %2053 = vmatprep.subr.bf16.mxu0 0
        %2054 = vmatpush1.bf16.xpose.msra.mxu0 0
        %2055 = vmatprep.subr.bf16.mxu0 0
        %2056 = vmatpush1.bf16.xpose.msra.mxu0 0
        %2057 = vmatprep.subr.bf16.mxu0 0
        %2058 = vmatpush1.bf16.xpose.msra.mxu0 0
        %2059 = vmatprep.subr.bf16.mxu0 0
        %2060 = vmatpush1.bf16.xpose.msra.mxu0 0
        %2061 = vmatprep.subr.bf16.mxu0 0
        %2062 = vmatpush1.bf16.xpose.msra.mxu0 0
        %2063 = vmatprep.subr.bf16.mxu0 0
        %2064 = vmatpush1.bf16.xpose.msra.mxu0 0
        %2065 = vmatprep.subr.bf16.mxu0 0
        %2066 = vmatpush1.bf16.xpose.msra.mxu0 0
        %2067 = vmatprep.subr.bf16.mxu0 0
        %2068 = vmatpush1.bf16.xpose.msra.mxu0 0
        %2069 = vmatprep.subr.bf16.mxu0 0
        %2070 = vmatpush1.bf16.xpose.msra.mxu0 0
        %2071 = vmatprep.subr.bf16.mxu0 0
        %2072 = vmatpush1.bf16.xpose.msra.mxu0 0
        %2073 = vmatprep.mubr.bf16.mxu0 %v1936
        %2074 = vmatmul.mubr.bf16.gmra.mrb[0].mxu0 %v1935
        %v2075 = vpop.f32.mrb[0].mxu0
        %v2076 = vadd.f32 0.0, %v2075
        %v2077 = vpop.f32.mrb[0].mxu0
        %v2078 = vpop.f32.mrb[0].mxu0
        %v2079 = vadd.f32 0.0, %v2078
        %v2080 = vpop.f32.mrb[0].mxu0
        %2081 = vdwg.mxu0
        %2082 = vmatprep.subr.bf16.mxu0 %v2012
        %2083 = vmatpush1.bf16.xpose.msra.mxu0 %v2011
        %2084 = vmatprep.subr.bf16.mxu0 %v2020
        %2085 = vmatpush1.bf16.xpose.msra.mxu0 %v2019
        %2086 = vmatprep.subr.bf16.mxu0 0
        %2087 = vmatpush1.bf16.xpose.msra.mxu0 0
        %2088 = vmatprep.subr.bf16.mxu0 0
        %2089 = vmatpush1.bf16.xpose.msra.mxu0 0
        %2090 = vmatprep.subr.bf16.mxu0 0
        %2091 = vmatpush1.bf16.xpose.msra.mxu0 0
        %2092 = vmatprep.subr.bf16.mxu0 0
        %2093 = vmatpush1.bf16.xpose.msra.mxu0 0
        %2094 = vmatprep.subr.bf16.mxu0 0
        %2095 = vmatpush1.bf16.xpose.msra.mxu0 0
        %2096 = vmatprep.subr.bf16.mxu0 0
        %2097 = vmatpush1.bf16.xpose.msra.mxu0 0
        %2098 = vmatprep.subr.bf16.mxu0 0
        %2099 = vmatpush1.bf16.xpose.msra.mxu0 0
        %2100 = vmatprep.subr.bf16.mxu0 0
        %2101 = vmatpush1.bf16.xpose.msra.mxu0 0
        %2102 = vmatprep.subr.bf16.mxu0 0
        %2103 = vmatpush1.bf16.xpose.msra.mxu0 0
        %2104 = vmatprep.subr.bf16.mxu0 0
        %2105 = vmatpush1.bf16.xpose.msra.mxu0 0
        %2106 = vmatprep.subr.bf16.mxu0 0
        %2107 = vmatpush1.bf16.xpose.msra.mxu0 0
        %2108 = vmatprep.subr.bf16.mxu0 0
        %2109 = vmatpush1.bf16.xpose.msra.mxu0 0
        %2110 = vmatprep.subr.bf16.mxu0 0
        %2111 = vmatpush1.bf16.xpose.msra.mxu0 0
        %2112 = vmatprep.subr.bf16.mxu0 0
        %2113 = vmatpush1.bf16.xpose.msra.mxu0 0
        %2114 = vmatprep.mubr.bf16.mxu0 %v1938
        %2115 = vmatmul.mubr.bf16.gmra.mrb[0].mxu0 %v1937
        %v2116 = vpop.f32.mrb[0].mxu0
        %v2117 = vadd.f32 %v2076, %v2116
        %v2118 = vpop.f32.mrb[0].mxu0
        %v2119 = vpop.f32.mrb[0].mxu0
        %v2120 = vadd.f32 %v2079, %v2119
        %v2121 = vpop.f32.mrb[0].mxu0
        %2122 = vdwg.mxu0
        %2123 = vmatprep.subr.bf16.mxu0 %v2014
        %2124 = vmatpush1.bf16.xpose.msra.mxu0 %v2013
        %2125 = vmatprep.subr.bf16.mxu0 %v2022
        %2126 = vmatpush1.bf16.xpose.msra.mxu0 %v2021
        %2127 = vmatprep.subr.bf16.mxu0 0
        %2128 = vmatpush1.bf16.xpose.msra.mxu0 0
        %2129 = vmatprep.subr.bf16.mxu0 0
        %2130 = vmatpush1.bf16.xpose.msra.mxu0 0
        %2131 = vmatprep.subr.bf16.mxu0 0
        %2132 = vmatpush1.bf16.xpose.msra.mxu0 0
        %2133 = vmatprep.subr.bf16.mxu0 0
        %2134 = vmatpush1.bf16.xpose.msra.mxu0 0
        %2135 = vmatprep.subr.bf16.mxu0 0
        %2136 = vmatpush1.bf16.xpose.msra.mxu0 0
        %2137 = vmatprep.subr.bf16.mxu0 0
        %2138 = vmatpush1.bf16.xpose.msra.mxu0 0
        %2139 = vmatprep.subr.bf16.mxu0 0
        %2140 = vmatpush1.bf16.xpose.msra.mxu0 0
        %2141 = vmatprep.subr.bf16.mxu0 0
        %2142 = vmatpush1.bf16.xpose.msra.mxu0 0
        %2143 = vmatprep.subr.bf16.mxu0 0
        %2144 = vmatpush1.bf16.xpose.msra.mxu0 0
        %2145 = vmatprep.subr.bf16.mxu0 0
        %2146 = vmatpush1.bf16.xpose.msra.mxu0 0
        %2147 = vmatprep.subr.bf16.mxu0 0
        %2148 = vmatpush1.bf16.xpose.msra.mxu0 0
        %2149 = vmatprep.subr.bf16.mxu0 0
        %2150 = vmatpush1.bf16.xpose.msra.mxu0 0
        %2151 = vmatprep.subr.bf16.mxu0 0
        %2152 = vmatpush1.bf16.xpose.msra.mxu0 0
        %2153 = vmatprep.subr.bf16.mxu0 0
        %2154 = vmatpush1.bf16.xpose.msra.mxu0 0
        %2155 = vmatprep.mubr.bf16.mxu0 %v1940
        %2156 = vmatmul.mubr.bf16.gmra.mrb[0].mxu0 %v1939
        %v2157 = vpop.f32.mrb[0].mxu0
        %v2158 = vadd.f32 %v2117, %v2157
        %v2159 = vpop.f32.mrb[0].mxu0
        %v2160 = vpop.f32.mrb[0].mxu0
        %v2161 = vadd.f32 %v2120, %v2160
        %v2162 = vpop.f32.mrb[0].mxu0
        %2163 = vdwg.mxu0
        %2164 = vmatprep.subr.bf16.mxu0 %v2016
        %2165 = vmatpush1.bf16.xpose.msra.mxu0 %v2015
        %2166 = vmatprep.subr.bf16.mxu0 %v2024
        %2167 = vmatpush1.bf16.xpose.msra.mxu0 %v2023
        %2168 = vmatprep.subr.bf16.mxu0 0
        %2169 = vmatpush1.bf16.xpose.msra.mxu0 0
        %2170 = vmatprep.subr.bf16.mxu0 0
        %2171 = vmatpush1.bf16.xpose.msra.mxu0 0
        %2172 = vmatprep.subr.bf16.mxu0 0
        %2173 = vmatpush1.bf16.xpose.msra.mxu0 0
        %2174 = vmatprep.subr.bf16.mxu0 0
        %2175 = vmatpush1.bf16.xpose.msra.mxu0 0
        %2176 = vmatprep.subr.bf16.mxu0 0
        %2177 = vmatpush1.bf16.xpose.msra.mxu0 0
        %2178 = vmatprep.subr.bf16.mxu0 0
        %2179 = vmatpush1.bf16.xpose.msra.mxu0 0
        %2180 = vmatprep.subr.bf16.mxu0 0
        %2181 = vmatpush1.bf16.xpose.msra.mxu0 0
        %2182 = vmatprep.subr.bf16.mxu0 0
        %2183 = vmatpush1.bf16.xpose.msra.mxu0 0
        %2184 = vmatprep.subr.bf16.mxu0 0
        %2185 = vmatpush1.bf16.xpose.msra.mxu0 0
        %2186 = vmatprep.subr.bf16.mxu0 0
        %2187 = vmatpush1.bf16.xpose.msra.mxu0 0
        %2188 = vmatprep.subr.bf16.mxu0 0
        %2189 = vmatpush1.bf16.xpose.msra.mxu0 0
        %2190 = vmatprep.subr.bf16.mxu0 0
        %2191 = vmatpush1.bf16.xpose.msra.mxu0 0
        %2192 = vmatprep.subr.bf16.mxu0 0
        %2193 = vmatpush1.bf16.xpose.msra.mxu0 0
        %2194 = vmatprep.subr.bf16.mxu0 0
        %2195 = vmatpush1.bf16.xpose.msra.mxu0 0
        %2196 = vmatprep.mubr.bf16.mxu0 %v1942
        %2197 = vmatmul.mubr.bf16.gmra.mrb[0].mxu0 %v1941
        %v2198 = vpop.f32.mrb[0].mxu0
        %v2199 = vadd.f32 %v2158, %v2198
        %v2200 = vpop.f32.mrb[0].mxu0
        %v2201 = vpop.f32.mrb[0].mxu0
        %v2202 = vadd.f32 %v2161, %v2201
        %v2203 = vpop.f32.mrb[0].mxu0
        %2204 = vdwg.mxu0
        %v2205 = vadd.f32 %v1943, %v2199
        %v2206 = vadd.f32 %v1944, %v2202
        %2207 = vst.msk [vmem:[#allocation3] sm:$0xff] %vm1743, %v2205
        %2208 = vst.msk [vmem:[#allocation3 + $0x8] sm:$0xff] %vm1743, %v2206
        %p2209 = scmp.eq.s32.totalorder %s52, 1
        // Predicated region
        $region157: #{transformer_vae_encoder.1} parent=95 // pred_check
          %p2210 = pneg %p2209
        $region158: #{transformer_vae_encoder.1} parent=95 // pred_check_branch
          %2212 = sbr.rel (%p2210) target = $region160
        $region159: #{transformer_vae_encoder.1} parent=95 // pred_region
          %v2213 = vld [vmem:[#allocation2] sm:$0xff]
          %v2214 = vld [vmem:[#allocation2 + $0x8] sm:$0xff]
          %v2215 = vld [vmem:[#allocation3] sm:$0xff]
          %v2216 = vld [vmem:[#allocation3 + $0x8] sm:$0xff]
          %v2217 = vadd.f32 %v2213, %v2215
          %v2218 = vadd.f32 %v2214, %v2216
          %v2219 = vld [vmem:[%s856] sm:$0x1]
          %v2221 = vlaneseq
          %v2222 = vshrl.u32 %v2221, 7
          %v2223 = vsub.s32 0, %v2222
          %v2224 = vrot.slane %v2219, %v2223
          %v2226 = vadd.f32 %v2217, %v2224
          %v2227 = vadd.f32 %v2218, %v2224
          %v2228 = vld [vmem:[%s880] sm:$0x1]
          %v2229 = vld [vmem:[%s888] sm:$0x1]
          %v2230 = vsel %vm1743, %v2226, 0.0
          %2231 = vadd.xlane.f32.xlu0 %v2230
          %v2232 = vpop.xlane.xlu0 %2231
          %v2233 = vsel %vm1743, %v2227, 0.0
          %2234 = vadd.xlane.f32.xlu0 %v2233
          %v2235 = vpop.xlane.xlu0 %2234
          %v2236 = vrcp.pop 32.0
          %v2237 = vmul.f32 %v2232, %v2236
          %v2238 = vmul.f32 %v2235, %v2236
          %v2239 = vsub.f32 %v2226, %v2237
          %v2240 = vsub.f32 %v2227, %v2238
          %v2241 = vmul.f32 %v2239, %v2239
          %v2242 = vmul.f32 %v2240, %v2240
          %v2243 = vsel %vm1743, %v2241, 0.0
          %2244 = vadd.xlane.f32.xlu0 %v2243
          %v2245 = vpop.xlane.xlu0 %2244
          %v2246 = vsel %vm1743, %v2242, 0.0
          %2247 = vadd.xlane.f32.xlu0 %v2246
          %v2248 = vpop.xlane.xlu0 %2247
          %v2249 = vmul.f32 %v2245, %v2236
          %v2250 = vmul.f32 %v2248, %v2236
          %v2251 = vadd.f32 %v2249, 1e-05
          %v2252 = vadd.f32 %v2250, 1e-05
          %v2253 = vrsqrt.pop %v2251
          %v2254 = vrsqrt.pop %v2252
          %v2255 = vmul.f32 %v2239, %v2253
          %v2256 = vmul.f32 %v2240, %v2254
          %v2258 = vlaneseq
          %v2259 = vshrl.u32 %v2258, 7
          %v2260 = vsub.s32 0, %v2259
          %v2261 = vrot.slane %v2228, %v2260
          %v2263 = vmul.f32 %v2255, %v2261
          %v2264 = vmul.f32 %v2256, %v2261
          %v2266 = vlaneseq
          %v2267 = vshrl.u32 %v2266, 7
          %v2268 = vsub.s32 0, %v2267
          %v2269 = vrot.slane %v2229, %v2268
          %v2271 = vadd.f32 %v2263, %v2269
          %v2272 = vadd.f32 %v2264, %v2269
          %2273 = vst.msk [vmem:[#allocation2] sm:$0xff] %vm1743, %v2271
          %2274 = vst.msk [vmem:[#allocation2 + $0x8] sm:$0xff] %vm1743, %v2272
          %p2275 = scmp.eq.s32.totalorder %s51, 1
          // Predicated region
          $region161: #{transformer_vae_encoder.1} parent=159 // pred_check
            %p2276 = pneg %p2275
          $region162: #{transformer_vae_encoder.1} parent=159 // pred_check_branch
            %2278 = sbr.rel (%p2276) target = $region164
          $region163: #{transformer_vae_encoder.1} parent=159 // pred_region
            %v2279 = vld [vmem:[%s16] sm:$0x3]
            %vm2280 = vcmask 130048
            %v2282 = vsel %vm2280, %v2279, 0
            %2284 = vmatprep.subr.mxu0 0.0
            %2285 = vmatpush1.msra.mxu0 %v2271
            %2286 = vmatprep.subr.mxu0 0.0
            %2287 = vmatpush1.msra.mxu0 %v2272
            %2288 = vmatprep.subr.mxu0 0.0
            %2289 = vmatpush1.msra.mxu0 0.0
            %2290 = vmatprep.subr.mxu0 0.0
            %2291 = vmatpush1.msra.mxu0 0.0
            %2292 = vmatprep.subr.mxu0 0.0
            %2293 = vmatpush1.msra.mxu0 0.0
            %2294 = vmatprep.subr.mxu0 0.0
            %2295 = vmatpush1.msra.mxu0 0.0
            %2296 = vmatprep.subr.mxu0 0.0
            %2297 = vmatpush1.msra.mxu0 0.0
            %2298 = vmatprep.subr.mxu0 0.0
            %2299 = vmatpush1.msra.mxu0 0.0
            %2300 = vmatprep.subr.mxu0 0.0
            %2301 = vmatpush1.msra.mxu0 0.0
            %2302 = vmatprep.subr.mxu0 0.0
            %2303 = vmatpush1.msra.mxu0 0.0
            %2304 = vmatprep.subr.mxu0 0.0
            %2305 = vmatpush1.msra.mxu0 0.0
            %2306 = vmatprep.subr.mxu0 0.0
            %2307 = vmatpush1.msra.mxu0 0.0
            %2308 = vmatprep.subr.mxu0 0.0
            %2309 = vmatpush1.msra.mxu0 0.0
            %2310 = vmatprep.subr.mxu0 0.0
            %2311 = vmatpush1.msra.mxu0 0.0
            %2312 = vmatprep.subr.mxu0 0.0
            %2313 = vmatpush1.msra.mxu0 0.0
            %2314 = vmatprep.subr.mxu0 0.0
            %2315 = vmatpush1.msra.mxu0 0.0
            %2316 = vmatprep.subr.mxu0 0.0
            %2317 = vmatpush1.msra.mxu0 0.0
            %2318 = vmatprep.subr.mxu0 0.0
            %2319 = vmatpush1.msra.mxu0 0.0
            %2320 = vmatprep.subr.mxu0 0.0
            %2321 = vmatpush1.msra.mxu0 0.0
            %2322 = vmatprep.subr.mxu0 0.0
            %2323 = vmatpush1.msra.mxu0 0.0
            %2324 = vmatprep.subr.mxu0 0.0
            %2325 = vmatpush1.msra.mxu0 0.0
            %2326 = vmatprep.subr.mxu0 0.0
            %2327 = vmatpush1.msra.mxu0 0.0
            %2328 = vmatprep.subr.mxu0 0.0
            %2329 = vmatpush1.msra.mxu0 0.0
            %2330 = vmatprep.subr.mxu0 0.0
            %2331 = vmatpush1.msra.mxu0 0.0
            %2332 = vmatprep.subr.mxu0 0.0
            %2333 = vmatpush1.msra.mxu0 0.0
            %2334 = vmatprep.subr.mxu0 0.0
            %2335 = vmatpush1.msra.mxu0 0.0
            %2336 = vmatprep.subr.mxu0 0.0
            %2337 = vmatpush1.msra.mxu0 0.0
            %2338 = vmatprep.subr.mxu0 0.0
            %2339 = vmatpush1.msra.mxu0 0.0
            %2340 = vmatprep.subr.mxu0 0.0
            %2341 = vmatpush1.msra.mxu0 0.0
            %2342 = vmatprep.subr.mxu0 0.0
            %2343 = vmatpush1.msra.mxu0 0.0
            %2344 = vmatprep.subr.mxu0 0.0
            %2345 = vmatpush1.msra.mxu0 0.0
            %2346 = vmatprep.subr.mxu0 0.0
            %2347 = vmatpush1.msra.mxu0 0.0
            %2348 = vmatprep.mubr.f32.mxu0 0.0
            %2349 = vmatmul.mubr.f32.gmra.mrb[0].mxu0 %v2282
            %v2350 = vpop.f32.mrb[0].mxu0
            %v2351 = vadd.f32 0.0, %v2350
            %v2352 = vpop.f32.mrb[0].mxu0
            %2353 = vdwg.mxu0
            %v2354 = vld [vmem:[#allocation21] sm:$0xff]
            %v2355 = vld [vmem:[#allocation21 + $0x8] sm:$0xff]
            %v2356 = vld [vmem:[#allocation21 + $0x10] sm:$0xff]
            %v2357 = vld [vmem:[#allocation21 + $0x18] sm:$0xff]
            %v2358 = vld [vmem:[#allocation23] sm:$0x1]
            %v2360 = vlaneseq
            %v2361 = vshrl.u32 %v2360, 7
            %v2362 = vsub.s32 0, %v2361
            %v2363 = vrot.slane %v2358, %v2362
            %v2366 = vsel %vm1743, %v2351, 0
            %2368 = vmatprep.subr.mxu0 0.0
            %2369 = vmatpush1.msra.mxu0 %v2354
            %2370 = vmatprep.subr.mxu0 0.0
            %2371 = vmatpush1.msra.mxu0 %v2355
            %2372 = vmatprep.subr.mxu0 0.0
            %2373 = vmatpush1.msra.mxu0 %v2356
            %2374 = vmatprep.subr.mxu0 0.0
            %2375 = vmatpush1.msra.mxu0 %v2357
            %2376 = vmatprep.subr.mxu0 0.0
            %2377 = vmatpush1.msra.mxu0 0.0
            %2378 = vmatprep.subr.mxu0 0.0
            %2379 = vmatpush1.msra.mxu0 0.0
            %2380 = vmatprep.subr.mxu0 0.0
            %2381 = vmatpush1.msra.mxu0 0.0
            %2382 = vmatprep.subr.mxu0 0.0
            %2383 = vmatpush1.msra.mxu0 0.0
            %2384 = vmatprep.subr.mxu0 0.0
            %2385 = vmatpush1.msra.mxu0 0.0
            %2386 = vmatprep.subr.mxu0 0.0
            %2387 = vmatpush1.msra.mxu0 0.0
            %2388 = vmatprep.subr.mxu0 0.0
            %2389 = vmatpush1.msra.mxu0 0.0
            %2390 = vmatprep.subr.mxu0 0.0
            %2391 = vmatpush1.msra.mxu0 0.0
            %2392 = vmatprep.subr.mxu0 0.0
            %2393 = vmatpush1.msra.mxu0 0.0
            %2394 = vmatprep.subr.mxu0 0.0
            %2395 = vmatpush1.msra.mxu0 0.0
            %2396 = vmatprep.subr.mxu0 0.0
            %2397 = vmatpush1.msra.mxu0 0.0
            %2398 = vmatprep.subr.mxu0 0.0
            %2399 = vmatpush1.msra.mxu0 0.0
            %2400 = vmatprep.subr.mxu0 0.0
            %2401 = vmatpush1.msra.mxu0 0.0
            %2402 = vmatprep.subr.mxu0 0.0
            %2403 = vmatpush1.msra.mxu0 0.0
            %2404 = vmatprep.subr.mxu0 0.0
            %2405 = vmatpush1.msra.mxu0 0.0
            %2406 = vmatprep.subr.mxu0 0.0
            %2407 = vmatpush1.msra.mxu0 0.0
            %2408 = vmatprep.subr.mxu0 0.0
            %2409 = vmatpush1.msra.mxu0 0.0
            %2410 = vmatprep.subr.mxu0 0.0
            %2411 = vmatpush1.msra.mxu0 0.0
            %2412 = vmatprep.subr.mxu0 0.0
            %2413 = vmatpush1.msra.mxu0 0.0
            %2414 = vmatprep.subr.mxu0 0.0
            %2415 = vmatpush1.msra.mxu0 0.0
            %2416 = vmatprep.subr.mxu0 0.0
            %2417 = vmatpush1.msra.mxu0 0.0
            %2418 = vmatprep.subr.mxu0 0.0
            %2419 = vmatpush1.msra.mxu0 0.0
            %2420 = vmatprep.subr.mxu0 0.0
            %2421 = vmatpush1.msra.mxu0 0.0
            %2422 = vmatprep.subr.mxu0 0.0
            %2423 = vmatpush1.msra.mxu0 0.0
            %2424 = vmatprep.subr.mxu0 0.0
            %2425 = vmatpush1.msra.mxu0 0.0
            %2426 = vmatprep.subr.mxu0 0.0
            %2427 = vmatpush1.msra.mxu0 0.0
            %2428 = vmatprep.subr.mxu0 0.0
            %2429 = vmatpush1.msra.mxu0 0.0
            %2430 = vmatprep.subr.mxu0 0.0
            %2431 = vmatpush1.msra.mxu0 0.0
            %2432 = vmatprep.mubr.f32.mxu0 0.0
            %2433 = vmatmul.mubr.f32.gmra.mrb[0].mxu0 %v2366
            %v2434 = vpop.f32.mrb[0].mxu0
            %v2435 = vadd.f32 %v2363, %v2434
            %v2436 = vpop.f32.mrb[0].mxu0
            %2437 = vdwg.mxu0
            %vm2438 = vcmask 254976
            %2439 = vst.msk [vmem:[%s19] sm:$0x3] %vm2438, %v2435
          $region164: #{transformer_vae_encoder.1} parent=159 // pred_fallthru
            _
        $region160: #{transformer_vae_encoder.1} parent=95 // pred_fallthru
          _
        // Predicated region
        $region165: #{transformer_vae_encoder.1} parent=95 // pred_check
          %p2440 = pneg %p537
        $region166: #{transformer_vae_encoder.1} parent=95 // pred_check_branch
          %2442 = sbr.rel (%p2440) target = $region168
        $region167: #{transformer_vae_encoder.1} parent=95 // pred_region
          _
        $region168: #{transformer_vae_encoder.1} parent=95 // pred_fallthru
          _
        // Predicated region
        $region169: #{transformer_vae_encoder.1} parent=95 // pred_check
          %p2443 = pneg %p537
        $region170: #{transformer_vae_encoder.1} parent=95 // pred_check_branch
          %2445 = sbr.rel (%p2443) target = $region172
        $region171: #{transformer_vae_encoder.1} parent=95 // pred_region
          _
        $region172: #{transformer_vae_encoder.1} parent=95 // pred_fallthru
          _
      $region96: #{transformer_vae_encoder.1} parent=5 // pred_fallthru
        _
      %p2446 = scmp.le.s32.totalorder 2, %s42
      // Predicated region
      $region173: #{transformer_vae_encoder.1} parent=5 // pred_check
        %p2447 = pneg %p2446
      $region174: #{transformer_vae_encoder.1} parent=5 // pred_check_branch
        %2449 = sbr.rel (%p2447) target = $region176
      $region175: #{transformer_vae_encoder.1} parent=5 // pred_region
        %s2450 = ssub.s32 %s42, 2
      $region176: #{transformer_vae_encoder.1} parent=5 // pred_fallthru
        _
    $region6: #{transformer_vae_encoder.1} parent=1 // loop_footer
      %s46 = sadd.s32 1, %s42
    $region7: #{transformer_vae_encoder.1} parent=1 // loop_footer_branch
      %41 = sbr.rel target = $region3
    $region8: #{transformer_vae_encoder.1} parent=1 // loop_exit
      _
    %2451 = vsyncpa [#allocation5], 1
    %s2452 = scalar_lea.sflag [#allocation5], 1
    %2453 = vsyncpa %s2452, 1
    %2454 = vsyncpa [#allocation7], 1
    %s2455 = scalar_lea.sflag [#allocation7], 1
    %2456 = vsyncpa %s2455, 1
    %2457 = vsyncpa [#allocation10], 1
    %s2458 = scalar_lea.sflag [#allocation10], 1
    %2459 = vsyncpa %s2458, 1
    %2460 = vsyncpa [#allocation13], 1
    %s2461 = scalar_lea.sflag [#allocation13], 1
    %2462 = vsyncpa %s2461, 1
    %2463 = vsyncpa [#allocation16], 1
    %s2464 = scalar_lea.sflag [#allocation16], 1
    %2465 = vsyncpa %s2464, 1
    %2466 = vsyncpa [#allocation19], 1
    %s2467 = scalar_lea.sflag [#allocation19], 1
    %2468 = vsyncpa %s2467, 1
    %2469 = vsyncpa [#allocation22], 1

</llo_original>
